<compile_context>
chip_gen: v7x
topology: tpu7x:2x2x1
jax: 0.10.0
libtpu: 0.0.40
codegen_flags: <defaults>
</compile_context>

<pallas_src>
import functools
import math

import jax
import jax.numpy as jnp
from jax import lax
from jax.experimental import pallas as pl
from jax.experimental.pallas import tpu as pltpu

LN_EPS = 1e-5  # torch.nn.LayerNorm default


def _erf(x):
    # Abramowitz & Stegun 7.1.26 rational approximation, |err| <= 1.5e-7
    # (~f32 eps), built only from ops with guaranteed Mosaic lowerings.
    # TODO(synk): replace with native erf lowering if/when available in Mosaic.
    p = 0.3275911
    a1, a2, a3, a4, a5 = (0.254829592, -0.284496736, 1.421413741,
                          -1.453152027, 1.061405429)
    sgn = jnp.where(x >= 0.0, 1.0, -1.0)
    ax = jnp.abs(x)
    t = 1.0 / (1.0 + p * ax)
    poly = ((((a5 * t + a4) * t + a3) * t + a2) * t + a1) * t
    return sgn * (1.0 - poly * jnp.exp(-ax * ax))


def _gelu_exact(x):
    # torch.nn.GELU() default is the exact (erf-based) form; kept in f32.
    return 0.5 * x * (1.0 + _erf(x * (1.0 / math.sqrt(2.0))))


def _layernorm(x, g, b):
    mu = jnp.mean(x, axis=-1, keepdims=True)
    xc = x - mu
    var = jnp.mean(xc * xc, axis=-1, keepdims=True)
    return xc * lax.rsqrt(var + LN_EPS) * g + b


def _transformer_kernel(num_heads,
                        x_ref,
                        ln1_g, ln1_b, wqkv, bqkv, wo, bo,
                        ln2_g, ln2_b, w1, b1, w2, b2,
                        out_ref):
    d = pl.program_id(1)  # depth (innermost, 'arbitrary') grid axis

    # Layer 0: seed the VMEM-resident activation block from the input.
    @pl.when(d == 0)
    def _():
        out_ref[...] = x_ref[...]

    x = out_ref[0]                       # (S, E) f32, resident across depth
    S, E = x.shape
    dh = E // num_heads

    # ---- Self attention (pre-LN) ----
    h = _layernorm(x, ln1_g[0], ln1_b[0])
    # Fused QKV projection: one big bf16 MXU op (f32 accumulation).
    # Note: 1/sqrt(dh) has been folded into the q columns of wqkv / bqkv at
    # pack time, so no per-head scaling is needed here.
    qkv = jnp.dot(h.astype(jnp.bfloat16), wqkv[0],
                  preferred_element_type=jnp.float32) + bqkv[0]
    q = qkv[:, :E].astype(jnp.bfloat16)
    k = qkv[:, E:2 * E].astype(jnp.bfloat16)
    v = qkv[:, 2 * E:].astype(jnp.bfloat16)

    head_outs = []
    for hd in range(num_heads):
        lo = hd * dh
        qh = q[:, lo:lo + dh]
        kh = k[:, lo:lo + dh]
        vh = v[:, lo:lo + dh]
        # 'qd,kd->qk' without an explicit transpose.
        s = lax.dot_general(qh, kh, (((1,), (1,)), ((), ())),
                            preferred_element_type=jnp.float32)
        s = s - jnp.max(s, axis=-1, keepdims=True)
        p = jnp.exp(s)
        # approx reciprocal -> EUP slot; avoids a VALU divide over (S, S).
        p = p * pl.reciprocal(jnp.sum(p, axis=-1, keepdims=True), approx=True)
        head_outs.append(
            jnp.dot(p.astype(jnp.bfloat16), vh,
                    preferred_element_type=jnp.float32))

    # Concatenate head outputs in registers (no VMEM scratch, no masked
    # partial stores) and do one lane-dense output projection.
    attn = jnp.concatenate(head_outs, axis=-1)            # (S, E) f32
    attn = jnp.dot(attn.astype(jnp.bfloat16), wo[0],
                   preferred_element_type=jnp.float32) + bo[0]
    x1 = x + attn

    # ---- Feed forward (pre-LN) ----
    h2 = _layernorm(x1, ln2_g[0], ln2_b[0])
    f = jnp.dot(h2.astype(jnp.bfloat16), w1[0],
                preferred_element_type=jnp.float32) + b1[0]
    f = _gelu_exact(f)
    f = jnp.dot(f.astype(jnp.bfloat16), w2[0],
                preferred_element_type=jnp.float32) + b2[0]

    out_ref[0] = x1 + f


_PACKED_ORDER = ("ln1_g", "ln1_b", "wqkv", "bqkv", "wo", "bo",
                 "ln2_g", "ln2_b", "w1", "b1", "w2", "b2")


def pack_params(params, num_heads):
    """Stack per-layer params along a leading depth axis, fuse QKV, fold the
    attention scale 1/sqrt(dh) into the q weights/bias, and cast the big
    weight matrices to bf16 (LayerNorm params / biases stay f32)."""
    E = params[0]["wq"].shape[0]
    dh = E // num_heads
    scale = 1.0 / math.sqrt(dh)

    def stack(name):
        return jnp.stack([p[name] for p in params], axis=0)

    wqkv = jnp.stack(
        [jnp.concatenate([p["wq"] * scale, p["wk"], p["wv"]], axis=1)
         for p in params], axis=0).astype(jnp.bfloat16)     # (D, E, 3E)
    bqkv = jnp.stack(
        [jnp.concatenate([p["bq"] * scale, p["bk"], p["bv"]], axis=1)
         for p in params], axis=0)                           # (D, 1, 3E) f32
    return {
        "ln1_g": stack("ln1_g"), "ln1_b": stack("ln1_b"),
        "wqkv": wqkv, "bqkv": bqkv,
        "wo": stack("wo").astype(jnp.bfloat16), "bo": stack("bo"),
        "ln2_g": stack("ln2_g"), "ln2_b": stack("ln2_b"),
        "w1": stack("w1").astype(jnp.bfloat16), "b1": stack("b1"),
        "w2": stack("w2").astype(jnp.bfloat16), "b2": stack("b2"),
    }


def transformers_forward(x, packed, num_heads):
    B, S, E = x.shape
    assert E % num_heads == 0, "embedding_dim must be divisible by heads_num"
    depth = packed["wqkv"].shape[0]
    weights = [packed[n] for n in _PACKED_ORDER]

    def wspec(a):
        _, r, c = a.shape
        return pl.BlockSpec((1, r, c), lambda b, d: (d, 0, 0))

    in_specs = ([pl.BlockSpec((1, S, E), lambda b, d: (b, 0, 0))]
                + [wspec(w) for w in weights])
    out_spec = pl.BlockSpec((1, S, E), lambda b, d: (b, 0, 0))

    kernel = functools.partial(_transformer_kernel, num_heads)
    return pl.pallas_call(
        kernel,
        out_shape=jax.ShapeDtypeStruct((B, S, E), jnp.float32),
        grid_spec=pltpu.PrefetchScalarGridSpec(
            num_scalar_prefetch=0,
            grid=(B, depth),          # depth innermost: activation resident
            in_specs=in_specs,
            out_specs=out_spec,
        ),
        compiler_params=pltpu.CompilerParams(
            dimension_semantics=("parallel", "arbitrary")),
    )(x, *weights)


def transformers_reference(x, params, num_heads):
    """Pure-JAX f32 reference of the PyTorch forward (for correctness check)."""
    B, S, E = x.shape
    dh = E // num_heads

    def ln(z, g, b):
        mu = jnp.mean(z, axis=-1, keepdims=True)
        var = jnp.mean((z - mu) ** 2, axis=-1, keepdims=True)
        return (z - mu) / jnp.sqrt(var + LN_EPS) * g + b

    for p in params:
        h = ln(x, p["ln1_g"], p["ln1_b"])
        q = (h @ p["wq"] + p["bq"]).reshape(B, S, num_heads, dh)
        k = (h @ p["wk"] + p["bk"]).reshape(B, S, num_heads, dh)
        v = (h @ p["wv"] + p["bv"]).reshape(B, S, num_heads, dh)
        s = jnp.einsum("bqhd,bkhd->bhqk", q, k) / math.sqrt(dh)
        a = jax.nn.softmax(s, axis=-1)
        o = jnp.einsum("bhqk,bkhd->bqhd", a, v).reshape(B, S, E)
        x = x + o @ p["wo"] + p["bo"]
        h2 = ln(x, p["ln2_g"], p["ln2_b"])
        f = jax.nn.gelu(h2 @ p["w1"] + p["b1"], approximate=False)
        x = x + f @ p["w2"] + p["b2"]
    return x


def init_params(key, embedding_dim, feed_forward_dim, depth):
    E, F = embedding_dim, feed_forward_dim
    params = []
    for d in range(depth):
        ks = jax.random.split(jax.random.fold_in(key, d), 12)
        n = lambda k, shape, scl=0.08: scl * jax.random.normal(k, shape, jnp.float32)
        params.append({
            "ln1_g": jnp.ones((1, E), jnp.float32),
            "ln1_b": jnp.zeros((1, E), jnp.float32),
            "wq": n(ks[0], (E, E)), "wk": n(ks[1], (E, E)), "wv": n(ks[2], (E, E)),
            "bq": n(ks[3], (1, E), 0.02),
            "bk": n(ks[4], (1, E), 0.02),
            "bv": n(ks[5], (1, E), 0.02),
            "wo": n(ks[6], (E, E)), "bo": n(ks[7], (1, E), 0.02),
            "ln2_g": jnp.ones((1, E), jnp.float32),
            "ln2_b": jnp.zeros((1, E), jnp.float32),
            "w1": n(ks[8], (E, F)), "b1": n(ks[9], (1, F), 0.02),
            "w2": n(ks[10], (F, E)), "b2": n(ks[11], (1, E), 0.02),
        })
    return params


if __name__ == "__main__":
    embedding_dim = 32
    heads_num = 4
    feed_forward_dim = 64
    depth = 2
    B, S = 2, 8

    key = jax.random.PRNGKey(0)
    x = jax.random.normal(jax.random.fold_in(key, 123),
                          (B, S, embedding_dim), jnp.float32)
    params = init_params(key, embedding_dim, feed_forward_dim, depth)
    packed = pack_params(params, heads_num)

    y = transformers_forward(x, packed, heads_num)
    jax.block_until_ready(y)
    assert y.shape == (B, S, embedding_dim)

    # Correctness check vs pure-JAX f32 reference (kernel uses bf16 weights,
    # so tolerances are set accordingly).
    y_ref = transformers_reference(x, params, heads_num)
    err = float(jnp.max(jnp.abs(y - y_ref)))
    assert jnp.allclose(y, y_ref, atol=3e-2, rtol=3e-2), f"max abs err {err}"

    print("KERNEL_OK")
</pallas_src>

<mosaic_0001>
module attributes {stable_mosaic.version = 11 : i64} {
  func.func @_transformer_kernel(%arg0: i32, %arg1: i32, %arg2: memref<1x8x32xf32, #tpu.memory_space<vmem>>, %arg3: memref<1x1x32xf32, #tpu.memory_space<vmem>>, %arg4: memref<1x1x32xf32, #tpu.memory_space<vmem>>, %arg5: memref<1x32x96xbf16, #tpu.memory_space<vmem>>, %arg6: memref<1x1x96xf32, #tpu.memory_space<vmem>>, %arg7: memref<1x32x32xbf16, #tpu.memory_space<vmem>>, %arg8: memref<1x1x32xf32, #tpu.memory_space<vmem>>, %arg9: memref<1x1x32xf32, #tpu.memory_space<vmem>>, %arg10: memref<1x1x32xf32, #tpu.memory_space<vmem>>, %arg11: memref<1x32x64xbf16, #tpu.memory_space<vmem>>, %arg12: memref<1x1x64xf32, #tpu.memory_space<vmem>>, %arg13: memref<1x64x32xbf16, #tpu.memory_space<vmem>>, %arg14: memref<1x1x32xf32, #tpu.memory_space<vmem>>, %arg15: memref<1x8x32xf32, #tpu.memory_space<vmem>>) attributes {dimension_semantics = [#tpu.dimension_semantics<parallel>, #tpu.dimension_semantics<arbitrary>], iteration_bounds = array<i64: 2, 2>, scalar_prefetch = 0 : i64, scratch_operands = 0 : i64, tpu.core_type = #tpu.core_type<tc>, window_params = [{transform_indices = @transform_0, window_bounds = array<i64: 1, 8, 32>}, {transform_indices = @transform_1, window_bounds = array<i64: 1, 1, 32>}, {transform_indices = @transform_2, window_bounds = array<i64: 1, 1, 32>}, {transform_indices = @transform_3, window_bounds = array<i64: 1, 32, 96>}, {transform_indices = @transform_4, window_bounds = array<i64: 1, 1, 96>}, {transform_indices = @transform_5, window_bounds = array<i64: 1, 32, 32>}, {transform_indices = @transform_6, window_bounds = array<i64: 1, 1, 32>}, {transform_indices = @transform_7, window_bounds = array<i64: 1, 1, 32>}, {transform_indices = @transform_8, window_bounds = array<i64: 1, 1, 32>}, {transform_indices = @transform_9, window_bounds = array<i64: 1, 32, 64>}, {transform_indices = @transform_10, window_bounds = array<i64: 1, 1, 64>}, {transform_indices = @transform_11, window_bounds = array<i64: 1, 64, 32>}, {transform_indices = @transform_12, window_bounds = array<i64: 1, 1, 32>}, {transform_indices = @transform_13, window_bounds = array<i64: 1, 8, 32>}]} {
    %c0_i32 = arith.constant 0 : i32
    %0 = arith.cmpi eq, %arg1, %c0_i32 : i32
    %1 = arith.extui %0 : i1 to i32
    %c0_i32_0 = arith.constant 0 : i32
    %2 = arith.cmpi ne, %1, %c0_i32_0 : i32
    scf.if %2 {
      %c0_87 = arith.constant 0 : index
      %c0_88 = arith.constant 0 : index
      %c0_89 = arith.constant 0 : index
      %202 = vector.load %arg2[%c0_87, %c0_88, %c0_89] : memref<1x8x32xf32, #tpu.memory_space<vmem>>, vector<1x8x32xf32>
      %c0_90 = arith.constant 0 : index
      %c0_91 = arith.constant 0 : index
      %c0_92 = arith.constant 0 : index
      %203 = vector.load %arg15[%c0_90, %c0_91, %c0_92] : memref<1x8x32xf32, #tpu.memory_space<vmem>>, vector<1x8x32xf32>
      tpu.vector_store %arg15[%c0_90, %c0_91, %c0_92], %202 {strides = array<i32>} : memref<1x8x32xf32, #tpu.memory_space<vmem>>, vector<1x8x32xf32>,
    } else {
    }
    %c0 = arith.constant 0 : index
    %c0_1 = arith.constant 0 : index
    %c0_2 = arith.constant 0 : index
    %3 = vector.load %arg15[%c0, %c0_1, %c0_2] : memref<1x8x32xf32, #tpu.memory_space<vmem>>, vector<1x8x32xf32>
    %4 = vector.shape_cast %3 : vector<1x8x32xf32> to vector<8x32xf32>
    %c0_3 = arith.constant 0 : index
    %c0_4 = arith.constant 0 : index
    %c0_5 = arith.constant 0 : index
    %5 = vector.load %arg3[%c0_3, %c0_4, %c0_5] : memref<1x1x32xf32, #tpu.memory_space<vmem>>, vector<1x1x32xf32>
    %6 = vector.shape_cast %5 : vector<1x1x32xf32> to vector<1x32xf32>
    %c0_6 = arith.constant 0 : index
    %c0_7 = arith.constant 0 : index
    %c0_8 = arith.constant 0 : index
    %7 = vector.load %arg4[%c0_6, %c0_7, %c0_8] : memref<1x1x32xf32, #tpu.memory_space<vmem>>, vector<1x1x32xf32>
    %8 = vector.shape_cast %7 : vector<1x1x32xf32> to vector<1x32xf32>
    %cst = arith.constant dense<0.000000e+00> : vector<8xf32>
    %9 = vector.multi_reduction <add>, %4, %cst [1] : vector<8x32xf32> to vector<8xf32>
    %10 = vector.shape_cast %9 : vector<8xf32> to vector<8x1xf32>
    %cst_9 = arith.constant 3.200000e+01 : f32
    %11 = vector.broadcast %cst_9 : f32 to vector<8x1xf32>
    %12 = arith.divf %10, %11 : vector<8x1xf32>
    %13 = vector.broadcast %12 : vector<8x1xf32> to vector<8x32xf32>
    %14 = arith.subf %4, %13 : vector<8x32xf32>
    %15 = arith.mulf %14, %14 : vector<8x32xf32>
    %cst_10 = arith.constant dense<0.000000e+00> : vector<8xf32>
    %16 = vector.multi_reduction <add>, %15, %cst_10 [1] : vector<8x32xf32> to vector<8xf32>
    %17 = vector.shape_cast %16 : vector<8xf32> to vector<8x1xf32>
    %cst_11 = arith.constant 3.200000e+01 : f32
    %18 = vector.broadcast %cst_11 : f32 to vector<8x1xf32>
    %19 = arith.divf %17, %18 : vector<8x1xf32>
    %cst_12 = arith.constant 9.99999974E-6 : f32
    %20 = vector.broadcast %cst_12 : f32 to vector<8x1xf32>
    %21 = arith.addf %19, %20 : vector<8x1xf32>
    %22 = math.rsqrt %21 : vector<8x1xf32>
    %23 = vector.broadcast %22 : vector<8x1xf32> to vector<8x32xf32>
    %24 = arith.mulf %14, %23 : vector<8x32xf32>
    %25 = vector.broadcast %6 : vector<1x32xf32> to vector<8x32xf32>
    %26 = arith.mulf %24, %25 : vector<8x32xf32>
    %27 = vector.broadcast %8 : vector<1x32xf32> to vector<8x32xf32>
    %28 = arith.addf %26, %27 : vector<8x32xf32>
    %29 = arith.truncf %28 : vector<8x32xf32> to vector<8x32xbf16>
    %c0_13 = arith.constant 0 : index
    %c0_14 = arith.constant 0 : index
    %c0_15 = arith.constant 0 : index
    %30 = vector.load %arg5[%c0_13, %c0_14, %c0_15] : memref<1x32x96xbf16, #tpu.memory_space<vmem>>, vector<1x32x96xbf16>
    %31 = vector.shape_cast %30 : vector<1x32x96xbf16> to vector<32x96xbf16>
    %cst_16 = arith.constant dense<0.000000e+00> : vector<8x96xf32>
    %32 = tpu.matmul %29, %31, %cst_16 {dimension_numbers = #tpu.dot_dimension_numbers<[1], [0], [0], [1], [0, 0, 1, 1], [], []>} : vector<8x32xbf16>, vector<32x96xbf16>, vector<8x96xf32> -> vector<8x96xf32>
    %c0_17 = arith.constant 0 : index
    %c0_18 = arith.constant 0 : index
    %c0_19 = arith.constant 0 : index
    %33 = vector.load %arg6[%c0_17, %c0_18, %c0_19] : memref<1x1x96xf32, #tpu.memory_space<vmem>>, vector<1x1x96xf32>
    %34 = vector.shape_cast %33 : vector<1x1x96xf32> to vector<1x96xf32>
    %35 = vector.broadcast %34 : vector<1x96xf32> to vector<8x96xf32>
    %36 = arith.addf %32, %35 : vector<8x96xf32>
    %37 = vector.extract_strided_slice %36 {offsets = [0, 0], sizes = [8, 32], strides = [1, 1]} : vector<8x96xf32> to vector<8x32xf32>
    %38 = arith.truncf %37 : vector<8x32xf32> to vector<8x32xbf16>
    %39 = vector.extract_strided_slice %36 {offsets = [0, 32], sizes = [8, 32], strides = [1, 1]} : vector<8x96xf32> to vector<8x32xf32>
    %40 = arith.truncf %39 : vector<8x32xf32> to vector<8x32xbf16>
    %41 = vector.extract_strided_slice %36 {offsets = [0, 64], sizes = [8, 32], strides = [1, 1]} : vector<8x96xf32> to vector<8x32xf32>
    %42 = arith.truncf %41 : vector<8x32xf32> to vector<8x32xbf16>
    %43 = vector.extract_strided_slice %38 {offsets = [0, 0], sizes = [8, 8], strides = [1, 1]} : vector<8x32xbf16> to vector<8x8xbf16>
    %44 = vector.extract_strided_slice %40 {offsets = [0, 0], sizes = [8, 8], strides = [1, 1]} : vector<8x32xbf16> to vector<8x8xbf16>
    %45 = vector.extract_strided_slice %42 {offsets = [0, 0], sizes = [8, 8], strides = [1, 1]} : vector<8x32xbf16> to vector<8x8xbf16>
    %cst_20 = arith.constant dense<0.000000e+00> : vector<8x8xf32>
    %46 = tpu.matmul %43, %44, %cst_20 {dimension_numbers = #tpu.dot_dimension_numbers<[1], [1], [0], [0], [0, 0, 1, 0], [], []>} : vector<8x8xbf16>, vector<8x8xbf16>, vector<8x8xf32> -> vector<8x8xf32>
    %cst_21 = arith.constant dense<0xFF800000> : vector<8xf32>
    %47 = vector.multi_reduction <maximumf>, %46, %cst_21 [1] : vector<8x8xf32> to vector<8xf32>
    %48 = vector.shape_cast %47 : vector<8xf32> to vector<8x1xf32>
    %49 = vector.broadcast %48 : vector<8x1xf32> to vector<8x8xf32>
    %50 = arith.subf %46, %49 : vector<8x8xf32>
    %51 = math.exp %50 : vector<8x8xf32>
    %cst_22 = arith.constant dense<0.000000e+00> : vector<8xf32>
    %52 = vector.multi_reduction <add>, %51, %cst_22 [1] : vector<8x8xf32> to vector<8xf32>
    %53 = vector.shape_cast %52 : vector<8xf32> to vector<8x1xf32>
    %54 = tpu.reciprocal %53 {approx = true} : vector<8x1xf32> -> vector<8x1xf32>
    %55 = vector.broadcast %54 : vector<8x1xf32> to vector<8x8xf32>
    %56 = arith.mulf %51, %55 : vector<8x8xf32>
    %57 = arith.truncf %56 : vector<8x8xf32> to vector<8x8xbf16>
    %cst_23 = arith.constant dense<0.000000e+00> : vector<8x8xf32>
    %58 = tpu.matmul %57, %45, %cst_23 {dimension_numbers = #tpu.dot_dimension_numbers<[1], [0], [0], [1], [0, 0, 1, 1], [], []>} : vector<8x8xbf16>, vector<8x8xbf16>, vector<8x8xf32> -> vector<8x8xf32>
    %59 = vector.extract_strided_slice %38 {offsets = [0, 8], sizes = [8, 8], strides = [1, 1]} : vector<8x32xbf16> to vector<8x8xbf16>
    %60 = vector.extract_strided_slice %40 {offsets = [0, 8], sizes = [8, 8], strides = [1, 1]} : vector<8x32xbf16> to vector<8x8xbf16>
    %61 = vector.extract_strided_slice %42 {offsets = [0, 8], sizes = [8, 8], strides = [1, 1]} : vector<8x32xbf16> to vector<8x8xbf16>
    %cst_24 = arith.constant dense<0.000000e+00> : vector<8x8xf32>
    %62 = tpu.matmul %59, %60, %cst_24 {dimension_numbers = #tpu.dot_dimension_numbers<[1], [1], [0], [0], [0, 0, 1, 0], [], []>} : vector<8x8xbf16>, vector<8x8xbf16>, vector<8x8xf32> -> vector<8x8xf32>
    %cst_25 = arith.constant dense<0xFF800000> : vector<8xf32>
    %63 = vector.multi_reduction <maximumf>, %62, %cst_25 [1] : vector<8x8xf32> to vector<8xf32>
    %64 = vector.shape_cast %63 : vector<8xf32> to vector<8x1xf32>
    %65 = vector.broadcast %64 : vector<8x1xf32> to vector<8x8xf32>
    %66 = arith.subf %62, %65 : vector<8x8xf32>
    %67 = math.exp %66 : vector<8x8xf32>
    %cst_26 = arith.constant dense<0.000000e+00> : vector<8xf32>
    %68 = vector.multi_reduction <add>, %67, %cst_26 [1] : vector<8x8xf32> to vector<8xf32>
    %69 = vector.shape_cast %68 : vector<8xf32> to vector<8x1xf32>
    %70 = tpu.reciprocal %69 {approx = true} : vector<8x1xf32> -> vector<8x1xf32>
    %71 = vector.broadcast %70 : vector<8x1xf32> to vector<8x8xf32>
    %72 = arith.mulf %67, %71 : vector<8x8xf32>
    %73 = arith.truncf %72 : vector<8x8xf32> to vector<8x8xbf16>
    %cst_27 = arith.constant dense<0.000000e+00> : vector<8x8xf32>
    %74 = tpu.matmul %73, %61, %cst_27 {dimension_numbers = #tpu.dot_dimension_numbers<[1], [0], [0], [1], [0, 0, 1, 1], [], []>} : vector<8x8xbf16>, vector<8x8xbf16>, vector<8x8xf32> -> vector<8x8xf32>
    %75 = vector.extract_strided_slice %38 {offsets = [0, 16], sizes = [8, 8], strides = [1, 1]} : vector<8x32xbf16> to vector<8x8xbf16>
    %76 = vector.extract_strided_slice %40 {offsets = [0, 16], sizes = [8, 8], strides = [1, 1]} : vector<8x32xbf16> to vector<8x8xbf16>
    %77 = vector.extract_strided_slice %42 {offsets = [0, 16], sizes = [8, 8], strides = [1, 1]} : vector<8x32xbf16> to vector<8x8xbf16>
    %cst_28 = arith.constant dense<0.000000e+00> : vector<8x8xf32>
    %78 = tpu.matmul %75, %76, %cst_28 {dimension_numbers = #tpu.dot_dimension_numbers<[1], [1], [0], [0], [0, 0, 1, 0], [], []>} : vector<8x8xbf16>, vector<8x8xbf16>, vector<8x8xf32> -> vector<8x8xf32>
    %cst_29 = arith.constant dense<0xFF800000> : vector<8xf32>
    %79 = vector.multi_reduction <maximumf>, %78, %cst_29 [1] : vector<8x8xf32> to vector<8xf32>
    %80 = vector.shape_cast %79 : vector<8xf32> to vector<8x1xf32>
    %81 = vector.broadcast %80 : vector<8x1xf32> to vector<8x8xf32>
    %82 = arith.subf %78, %81 : vector<8x8xf32>
    %83 = math.exp %82 : vector<8x8xf32>
    %cst_30 = arith.constant dense<0.000000e+00> : vector<8xf32>
    %84 = vector.multi_reduction <add>, %83, %cst_30 [1] : vector<8x8xf32> to vector<8xf32>
    %85 = vector.shape_cast %84 : vector<8xf32> to vector<8x1xf32>
    %86 = tpu.reciprocal %85 {approx = true} : vector<8x1xf32> -> vector<8x1xf32>
    %87 = vector.broadcast %86 : vector<8x1xf32> to vector<8x8xf32>
    %88 = arith.mulf %83, %87 : vector<8x8xf32>
    %89 = arith.truncf %88 : vector<8x8xf32> to vector<8x8xbf16>
    %cst_31 = arith.constant dense<0.000000e+00> : vector<8x8xf32>
    %90 = tpu.matmul %89, %77, %cst_31 {dimension_numbers = #tpu.dot_dimension_numbers<[1], [0], [0], [1], [0, 0, 1, 1], [], []>} : vector<8x8xbf16>, vector<8x8xbf16>, vector<8x8xf32> -> vector<8x8xf32>
    %91 = vector.extract_strided_slice %38 {offsets = [0, 24], sizes = [8, 8], strides = [1, 1]} : vector<8x32xbf16> to vector<8x8xbf16>
    %92 = vector.extract_strided_slice %40 {offsets = [0, 24], sizes = [8, 8], strides = [1, 1]} : vector<8x32xbf16> to vector<8x8xbf16>
    %93 = vector.extract_strided_slice %42 {offsets = [0, 24], sizes = [8, 8], strides = [1, 1]} : vector<8x32xbf16> to vector<8x8xbf16>
    %cst_32 = arith.constant dense<0.000000e+00> : vector<8x8xf32>
    %94 = tpu.matmul %91, %92, %cst_32 {dimension_numbers = #tpu.dot_dimension_numbers<[1], [1], [0], [0], [0, 0, 1, 0], [], []>} : vector<8x8xbf16>, vector<8x8xbf16>, vector<8x8xf32> -> vector<8x8xf32>
    %cst_33 = arith.constant dense<0xFF800000> : vector<8xf32>
    %95 = vector.multi_reduction <maximumf>, %94, %cst_33 [1] : vector<8x8xf32> to vector<8xf32>
    %96 = vector.shape_cast %95 : vector<8xf32> to vector<8x1xf32>
    %97 = vector.broadcast %96 : vector<8x1xf32> to vector<8x8xf32>
    %98 = arith.subf %94, %97 : vector<8x8xf32>
    %99 = math.exp %98 : vector<8x8xf32>
    %cst_34 = arith.constant dense<0.000000e+00> : vector<8xf32>
    %100 = vector.multi_reduction <add>, %99, %cst_34 [1] : vector<8x8xf32> to vector<8xf32>
    %101 = vector.shape_cast %100 : vector<8xf32> to vector<8x1xf32>
    %102 = tpu.reciprocal %101 {approx = true} : vector<8x1xf32> -> vector<8x1xf32>
    %103 = vector.broadcast %102 : vector<8x1xf32> to vector<8x8xf32>
    %104 = arith.mulf %99, %103 : vector<8x8xf32>
    %105 = arith.truncf %104 : vector<8x8xf32> to vector<8x8xbf16>
    %cst_35 = arith.constant dense<0.000000e+00> : vector<8x8xf32>
    %106 = tpu.matmul %105, %93, %cst_35 {dimension_numbers = #tpu.dot_dimension_numbers<[1], [0], [0], [1], [0, 0, 1, 1], [], []>} : vector<8x8xbf16>, vector<8x8xbf16>, vector<8x8xf32> -> vector<8x8xf32>
    %107 = tpu.concatenate %58, %74, %90, %106 in 1 : vector<8x8xf32>, vector<8x8xf32>, vector<8x8xf32>, vector<8x8xf32> -> vector<8x32xf32>
    %108 = arith.truncf %107 : vector<8x32xf32> to vector<8x32xbf16>
    %c0_36 = arith.constant 0 : index
    %c0_37 = arith.constant 0 : index
    %c0_38 = arith.constant 0 : index
    %109 = vector.load %arg7[%c0_36, %c0_37, %c0_38] : memref<1x32x32xbf16, #tpu.memory_space<vmem>>, vector<1x32x32xbf16>
    %110 = vector.shape_cast %109 : vector<1x32x32xbf16> to vector<32x32xbf16>
    %cst_39 = arith.constant dense<0.000000e+00> : vector<8x32xf32>
    %111 = tpu.matmul %108, %110, %cst_39 {dimension_numbers = #tpu.dot_dimension_numbers<[1], [0], [0], [1], [0, 0, 1, 1], [], []>} : vector<8x32xbf16>, vector<32x32xbf16>, vector<8x32xf32> -> vector<8x32xf32>
    %c0_40 = arith.constant 0 : index
    %c0_41 = arith.constant 0 : index
    %c0_42 = arith.constant 0 : index
    %112 = vector.load %arg8[%c0_40, %c0_41, %c0_42] : memref<1x1x32xf32, #tpu.memory_space<vmem>>, vector<1x1x32xf32>
    %113 = vector.shape_cast %112 : vector<1x1x32xf32> to vector<1x32xf32>
    %114 = vector.broadcast %113 : vector<1x32xf32> to vector<8x32xf32>
    %115 = arith.addf %111, %114 : vector<8x32xf32>
    %116 = arith.addf %4, %115 : vector<8x32xf32>
    %c0_43 = arith.constant 0 : index
    %c0_44 = arith.constant 0 : index
    %c0_45 = arith.constant 0 : index
    %117 = vector.load %arg9[%c0_43, %c0_44, %c0_45] : memref<1x1x32xf32, #tpu.memory_space<vmem>>, vector<1x1x32xf32>
    %118 = vector.shape_cast %117 : vector<1x1x32xf32> to vector<1x32xf32>
    %c0_46 = arith.constant 0 : index
    %c0_47 = arith.constant 0 : index
    %c0_48 = arith.constant 0 : index
    %119 = vector.load %arg10[%c0_46, %c0_47, %c0_48] : memref<1x1x32xf32, #tpu.memory_space<vmem>>, vector<1x1x32xf32>
    %120 = vector.shape_cast %119 : vector<1x1x32xf32> to vector<1x32xf32>
    %cst_49 = arith.constant dense<0.000000e+00> : vector<8xf32>
    %121 = vector.multi_reduction <add>, %116, %cst_49 [1] : vector<8x32xf32> to vector<8xf32>
    %122 = vector.shape_cast %121 : vector<8xf32> to vector<8x1xf32>
    %cst_50 = arith.constant 3.200000e+01 : f32
    %123 = vector.broadcast %cst_50 : f32 to vector<8x1xf32>
    %124 = arith.divf %122, %123 : vector<8x1xf32>
    %125 = vector.broadcast %124 : vector<8x1xf32> to vector<8x32xf32>
    %126 = arith.subf %116, %125 : vector<8x32xf32>
    %127 = arith.mulf %126, %126 : vector<8x32xf32>
    %cst_51 = arith.constant dense<0.000000e+00> : vector<8xf32>
    %128 = vector.multi_reduction <add>, %127, %cst_51 [1] : vector<8x32xf32> to vector<8xf32>
    %129 = vector.shape_cast %128 : vector<8xf32> to vector<8x1xf32>
    %cst_52 = arith.constant 3.200000e+01 : f32
    %130 = vector.broadcast %cst_52 : f32 to vector<8x1xf32>
    %131 = arith.divf %129, %130 : vector<8x1xf32>
    %cst_53 = arith.constant 9.99999974E-6 : f32
    %132 = vector.broadcast %cst_53 : f32 to vector<8x1xf32>
    %133 = arith.addf %131, %132 : vector<8x1xf32>
    %134 = math.rsqrt %133 : vector<8x1xf32>
    %135 = vector.broadcast %134 : vector<8x1xf32> to vector<8x32xf32>
    %136 = arith.mulf %126, %135 : vector<8x32xf32>
    %137 = vector.broadcast %118 : vector<1x32xf32> to vector<8x32xf32>
    %138 = arith.mulf %136, %137 : vector<8x32xf32>
    %139 = vector.broadcast %120 : vector<1x32xf32> to vector<8x32xf32>
    %140 = arith.addf %138, %139 : vector<8x32xf32>
    %141 = arith.truncf %140 : vector<8x32xf32> to vector<8x32xbf16>
    %c0_54 = arith.constant 0 : index
    %c0_55 = arith.constant 0 : index
    %c0_56 = arith.constant 0 : index
    %142 = vector.load %arg11[%c0_54, %c0_55, %c0_56] : memref<1x32x64xbf16, #tpu.memory_space<vmem>>, vector<1x32x64xbf16>
    %143 = vector.shape_cast %142 : vector<1x32x64xbf16> to vector<32x64xbf16>
    %cst_57 = arith.constant dense<0.000000e+00> : vector<8x64xf32>
    %144 = tpu.matmul %141, %143, %cst_57 {dimension_numbers = #tpu.dot_dimension_numbers<[1], [0], [0], [1], [0, 0, 1, 1], [], []>} : vector<8x32xbf16>, vector<32x64xbf16>, vector<8x64xf32> -> vector<8x64xf32>
    %c0_58 = arith.constant 0 : index
    %c0_59 = arith.constant 0 : index
    %c0_60 = arith.constant 0 : index
    %145 = vector.load %arg12[%c0_58, %c0_59, %c0_60] : memref<1x1x64xf32, #tpu.memory_space<vmem>>, vector<1x1x64xf32>
    %146 = vector.shape_cast %145 : vector<1x1x64xf32> to vector<1x64xf32>
    %147 = vector.broadcast %146 : vector<1x64xf32> to vector<8x64xf32>
    %148 = arith.addf %144, %147 : vector<8x64xf32>
    %cst_61 = arith.constant 5.000000e-01 : f32
    %149 = vector.broadcast %cst_61 : f32 to vector<8x64xf32>
    %150 = arith.mulf %149, %148 : vector<8x64xf32>
    %cst_62 = arith.constant 0.707106769 : f32
    %151 = vector.broadcast %cst_62 : f32 to vector<8x64xf32>
    %152 = arith.mulf %148, %151 : vector<8x64xf32>
    %cst_63 = arith.constant 0.000000e+00 : f32
    %153 = vector.broadcast %cst_63 : f32 to vector<8x64xf32>
    %154 = arith.cmpf oge, %152, %153 : vector<8x64xf32>
    %cst_64 = arith.constant 1.000000e+00 : f32
    %cst_65 = arith.constant -1.000000e+00 : f32
    %155 = vector.broadcast %cst_64 : f32 to vector<8x64xf32>
    %156 = vector.broadcast %cst_65 : f32 to vector<8x64xf32>
    %157 = arith.select %154, %155, %156 : vector<8x64xi1>, vector<8x64xf32>
    %158 = math.absf %152 : vector<8x64xf32>
    %cst_66 = arith.constant 0.327591091 : f32
    %159 = vector.broadcast %cst_66 : f32 to vector<8x64xf32>
    %160 = arith.mulf %159, %158 : vector<8x64xf32>
    %cst_67 = arith.constant 1.000000e+00 : f32
    %161 = vector.broadcast %cst_67 : f32 to vector<8x64xf32>
    %162 = arith.addf %161, %160 : vector<8x64xf32>
    %cst_68 = arith.constant 1.000000e+00 : f32
    %163 = vector.broadcast %cst_68 : f32 to vector<8x64xf32>
    %164 = arith.divf %163, %162 : vector<8x64xf32>
    %cst_69 = arith.constant 1.06140542 : f32
    %165 = vector.broadcast %cst_69 : f32 to vector<8x64xf32>
    %166 = arith.mulf %165, %164 : vector<8x64xf32>
    %cst_70 = arith.constant -1.45315206 : f32
    %167 = vector.broadcast %cst_70 : f32 to vector<8x64xf32>
    %168 = arith.addf %166, %167 : vector<8x64xf32>
    %169 = arith.mulf %168, %164 : vector<8x64xf32>
    %cst_71 = arith.constant 1.42141378 : f32
    %170 = vector.broadcast %cst_71 : f32 to vector<8x64xf32>
    %171 = arith.addf %169, %170 : vector<8x64xf32>
    %172 = arith.mulf %171, %164 : vector<8x64xf32>
    %cst_72 = arith.constant -0.284496725 : f32
    %173 = vector.broadcast %cst_72 : f32 to vector<8x64xf32>
    %174 = arith.addf %172, %173 : vector<8x64xf32>
    %175 = arith.mulf %174, %164 : vector<8x64xf32>
    %cst_73 = arith.constant 0.254829586 : f32
    %176 = vector.broadcast %cst_73 : f32 to vector<8x64xf32>
    %177 = arith.addf %175, %176 : vector<8x64xf32>
    %178 = arith.mulf %177, %164 : vector<8x64xf32>
    %cst_74 = arith.constant 0.000000e+00 : f32
    %179 = vector.broadcast %cst_74 : f32 to vector<8x64xf32>
    %180 = arith.subf %179, %158 : vector<8x64xf32>
    %181 = arith.mulf %180, %158 : vector<8x64xf32>
    %182 = math.exp %181 : vector<8x64xf32>
    %183 = arith.mulf %178, %182 : vector<8x64xf32>
    %cst_75 = arith.constant 1.000000e+00 : f32
    %184 = vector.broadcast %cst_75 : f32 to vector<8x64xf32>
    %185 = arith.subf %184, %183 : vector<8x64xf32>
    %186 = arith.mulf %157, %185 : vector<8x64xf32>
    %cst_76 = arith.constant 1.000000e+00 : f32
    %187 = vector.broadcast %cst_76 : f32 to vector<8x64xf32>
    %188 = arith.addf %187, %186 : vector<8x64xf32>
    %189 = arith.mulf %150, %188 : vector<8x64xf32>
    %190 = arith.truncf %189 : vector<8x64xf32> to vector<8x64xbf16>
    %c0_77 = arith.constant 0 : index
    %c0_78 = arith.constant 0 : index
    %c0_79 = arith.constant 0 : index
    %191 = vector.load %arg13[%c0_77, %c0_78, %c0_79] : memref<1x64x32xbf16, #tpu.memory_space<vmem>>, vector<1x64x32xbf16>
    %192 = vector.shape_cast %191 : vector<1x64x32xbf16> to vector<64x32xbf16>
    %cst_80 = arith.constant dense<0.000000e+00> : vector<8x32xf32>
    %193 = tpu.matmul %190, %192, %cst_80 {dimension_numbers = #tpu.dot_dimension_numbers<[1], [0], [0], [1], [0, 0, 1, 1], [], []>} : vector<8x64xbf16>, vector<64x32xbf16>, vector<8x32xf32> -> vector<8x32xf32>
    %c0_81 = arith.constant 0 : index
    %c0_82 = arith.constant 0 : index
    %c0_83 = arith.constant 0 : index
    %194 = vector.load %arg14[%c0_81, %c0_82, %c0_83] : memref<1x1x32xf32, #tpu.memory_space<vmem>>, vector<1x1x32xf32>
    %195 = vector.shape_cast %194 : vector<1x1x32xf32> to vector<1x32xf32>
    %196 = vector.broadcast %195 : vector<1x32xf32> to vector<8x32xf32>
    %197 = arith.addf %193, %196 : vector<8x32xf32>
    %198 = arith.addf %116, %197 : vector<8x32xf32>
    %c0_84 = arith.constant 0 : index
    %c0_85 = arith.constant 0 : index
    %c0_86 = arith.constant 0 : index
    %199 = vector.load %arg15[%c0_84, %c0_85, %c0_86] : memref<1x8x32xf32, #tpu.memory_space<vmem>>, vector<1x8x32xf32>
    %200 = vector.shape_cast %199 : vector<1x8x32xf32> to vector<8x32xf32>
    %201 = vector.shape_cast %198 : vector<8x32xf32> to vector<1x8x32xf32>
    tpu.vector_store %arg15[%c0_84, %c0_85, %c0_86], %201 {strides = array<i32>} : memref<1x8x32xf32, #tpu.memory_space<vmem>>, vector<1x8x32xf32>,
    return
  }
  func.func @transform_0(%arg0: i32, %arg1: i32) -> (i32, i32, i32) {
    %c0_i32 = arith.constant 0 : i32
    %c0_i32_0 = arith.constant 0 : i32
    %c0_i32_1 = arith.constant 0 : i32
    return %arg0, %c0_i32, %c0_i32_0 : i32, i32, i32
  }
  func.func @transform_1(%arg0: i32, %arg1: i32) -> (i32, i32, i32) {
    %c0_i32 = arith.constant 0 : i32
    %c0_i32_0 = arith.constant 0 : i32
    %c0_i32_1 = arith.constant 0 : i32
    return %arg1, %c0_i32, %c0_i32_0 : i32, i32, i32
  }
  func.func @transform_2(%arg0: i32, %arg1: i32) -> (i32, i32, i32) {
    %c0_i32 = arith.constant 0 : i32
    %c0_i32_0 = arith.constant 0 : i32
    %c0_i32_1 = arith.constant 0 : i32
    return %arg1, %c0_i32, %c0_i32_0 : i32, i32, i32
  }
  func.func @transform_3(%arg0: i32, %arg1: i32) -> (i32, i32, i32) {
    %c0_i32 = arith.constant 0 : i32
    %c0_i32_0 = arith.constant 0 : i32
    %c0_i32_1 = arith.constant 0 : i32
    return %arg1, %c0_i32, %c0_i32_0 : i32, i32, i32
  }
  func.func @transform_4(%arg0: i32, %arg1: i32) -> (i32, i32, i32) {
    %c0_i32 = arith.constant 0 : i32
    %c0_i32_0 = arith.constant 0 : i32
    %c0_i32_1 = arith.constant 0 : i32
    return %arg1, %c0_i32, %c0_i32_0 : i32, i32, i32
  }
  func.func @transform_5(%arg0: i32, %arg1: i32) -> (i32, i32, i32) {
    %c0_i32 = arith.constant 0 : i32
    %c0_i32_0 = arith.constant 0 : i32
    %c0_i32_1 = arith.constant 0 : i32
    return %arg1, %c0_i32, %c0_i32_0 : i32, i32, i32
  }
  func.func @transform_6(%arg0: i32, %arg1: i32) -> (i32, i32, i32) {
    %c0_i32 = arith.constant 0 : i32
    %c0_i32_0 = arith.constant 0 : i32
    %c0_i32_1 = arith.constant 0 : i32
    return %arg1, %c0_i32, %c0_i32_0 : i32, i32, i32
  }
  func.func @transform_7(%arg0: i32, %arg1: i32) -> (i32, i32, i32) {
    %c0_i32 = arith.constant 0 : i32
    %c0_i32_0 = arith.constant 0 : i32
    %c0_i32_1 = arith.constant 0 : i32
    return %arg1, %c0_i32, %c0_i32_0 : i32, i32, i32
  }
  func.func @transform_8(%arg0: i32, %arg1: i32) -> (i32, i32, i32) {
    %c0_i32 = arith.constant 0 : i32
    %c0_i32_0 = arith.constant 0 : i32
    %c0_i32_1 = arith.constant 0 : i32
    return %arg1, %c0_i32, %c0_i32_0 : i32, i32, i32
  }
  func.func @transform_9(%arg0: i32, %arg1: i32) -> (i32, i32, i32) {
    %c0_i32 = arith.constant 0 : i32
    %c0_i32_0 = arith.constant 0 : i32
    %c0_i32_1 = arith.constant 0 : i32
    return %arg1, %c0_i32, %c0_i32_0 : i32, i32, i32
  }
  func.func @transform_10(%arg0: i32, %arg1: i32) -> (i32, i32, i32) {
    %c0_i32 = arith.constant 0 : i32
    %c0_i32_0 = arith.constant 0 : i32
    %c0_i32_1 = arith.constant 0 : i32
    return %arg1, %c0_i32, %c0_i32_0 : i32, i32, i32
  }
  func.func @transform_11(%arg0: i32, %arg1: i32) -> (i32, i32, i32) {
    %c0_i32 = arith.constant 0 : i32
    %c0_i32_0 = arith.constant 0 : i32
    %c0_i32_1 = arith.constant 0 : i32
    return %arg1, %c0_i32, %c0_i32_0 : i32, i32, i32
  }
  func.func @transform_12(%arg0: i32, %arg1: i32) -> (i32, i32, i32) {
    %c0_i32 = arith.constant 0 : i32
    %c0_i32_0 = arith.constant 0 : i32
    %c0_i32_1 = arith.constant 0 : i32
    return %arg1, %c0_i32, %c0_i32_0 : i32, i32, i32
  }
  func.func @transform_13(%arg0: i32, %arg1: i32) -> (i32, i32, i32) {
    %c0_i32 = arith.constant 0 : i32
    %c0_i32_0 = arith.constant 0 : i32
    %c0_i32_1 = arith.constant 0 : i32
    return %arg0, %c0_i32, %c0_i32_0 : i32, i32, i32
  }
}

</mosaic_0001>

<llo_original>
// kernel: tpu_custom_call.1
$region0: #{tpu_custom_call.1}
  #allocation0 [shape = 'u32[]', space=smem, size = 0x4, offset = 0x4, fixed_abs, tag = 'smem constant byte address 0x4 - core index']
  #allocation1 [shape = 'u32[144,128]{1,0:T(1,128)}', space=vmem, size = 0x12000, scoped, tag = 'internal scratch']
  %s0 = inlined_call_operand.hbm [shape: f32[2,8,32], index: 0, kind: input, shape index: {}]
  %s1 = inlined_call_operand.vmem [shape: f32[2,1,32], index: 1, kind: input, shape index: {}]
  %s2 = inlined_call_operand.vmem [shape: f32[2,1,32], index: 2, kind: input, shape index: {}]
  %s3 = inlined_call_operand.vmem [shape: bf16[2,32,96], index: 3, kind: input, shape index: {}]
  %s4 = inlined_call_operand.vmem [shape: f32[2,1,96], index: 4, kind: input, shape index: {}]
  %s5 = inlined_call_operand.vmem [shape: bf16[2,32,32], index: 5, kind: input, shape index: {}]
  %s6 = inlined_call_operand.vmem [shape: f32[2,1,32], index: 6, kind: input, shape index: {}]
  %s7 = inlined_call_operand.hbm [shape: f32[2,1,32], index: 7, kind: input, shape index: {}]
  %s8 = inlined_call_operand.hbm [shape: f32[2,1,32], index: 8, kind: input, shape index: {}]
  %s9 = inlined_call_operand.vmem [shape: bf16[2,32,64], index: 9, kind: input, shape index: {}]
  %s10 = inlined_call_operand.hbm [shape: f32[2,1,64], index: 10, kind: input, shape index: {}]
  %s11 = inlined_call_operand.vmem [shape: bf16[2,64,32], index: 11, kind: input, shape index: {}]
  %s12 = inlined_call_operand.vmem [shape: f32[2,1,32], index: 12, kind: input, shape index: {}]
  %s13 = inlined_call_operand.hbm [shape: f32[2,8,32], index: 13, kind: output, shape index: {}]
  %s14 = sld [smem:[#allocation0]]
  $region105: #{tpu_custom_call.1} parent=0
    _
  %s16 = ssub.s32 1, %s14
  %s17 = scalar_select 0, %s16, %s14
  $region1: #{tpu_custom_call.1} parent=0
    #allocation2 [shape = 'u8[8192]{0}', space=vmem, size = 0x2000, scoped, tag = 'input window, operand 0']
    #allocation3 [shape = 's32[2]{0}', space=sflag, size = 0x8, scoped, tag = 'scoped memory for tpu_custom_call.1']
    #allocation4 [shape = 's32[2]{0}', space=sflag, size = 0x8, scoped, tag = 'scoped memory for tpu_custom_call.1']
    #allocation5 [shape = 'u8[1024]{0}', space=vmem, size = 0x400, scoped, tag = 'input window, operand 7']
    #allocation6 [shape = 's32[2]{0}', space=sflag, size = 0x8, scoped, tag = 'scoped memory for tpu_custom_call.1']
    #allocation7 [shape = 'u8[1024]{0}', space=vmem, size = 0x400, scoped, tag = 'input window, operand 8']
    #allocation8 [shape = 'u8[1024]{0}', space=vmem, size = 0x400, scoped, tag = 'input window, operand 10']
    #allocation9 [shape = 's32[2]{0}', space=sflag, size = 0x8, scoped, tag = 'scoped memory for tpu_custom_call.1']
    #allocation10 [shape = 'u8[8192]{0}', space=vmem, size = 0x2000, scoped, tag = 'output window, operand 0']
    %18 = vsyncpa [#allocation3], 0
    %s19 = scalar_lea.sflag [#allocation3], 1
    %20 = vsyncpa %s19, 0
    %21 = vsyncpa [#allocation6], 0
    %s22 = scalar_lea.sflag [#allocation6], 1
    %23 = vsyncpa %s22, 0
    %24 = vsyncpa [#allocation9], 0
    %s25 = scalar_lea.sflag [#allocation9], 1
    %26 = vsyncpa %s25, 0
    %27 = vsyncpa [#allocation4], 0
    %s28 = scalar_lea.sflag [#allocation4], 1
    %29 = vsyncpa %s28, 0
    loop: start=0, step=1, limit=6
    $region2: #{tpu_custom_call.1} parent=1 // loop_pre_header
      _
    $region3: #{tpu_custom_call.1} parent=1 // loop_header
      %s31 = sphi 0, %s35
      %p32 = scmp.ge.s32.totalorder %s31, 6
      %s38 = sphi 0, %s50
      %s39 = sphi 0, %s46
      %s40 = sphi 0, %s38
      %s41 = sphi 0, %s39
      %s42 = sphi 0, %s40
      %s43 = sphi 0, %s41
      %s53 = sphi 0, %s55
      %s56 = sphi 0, %s53
      %s57 = sphi 0, %s56
      %s73 = sphi 0, %s57
      %s79 = sphi 0, %s81
      %s82 = sphi 0, %s79
      %s83 = sphi 0, %s82
      %s99 = sphi 0, %s83
      %s105 = sphi 0, %s107
      %s108 = sphi 0, %s105
      %s109 = sphi 0, %s108
      %s125 = sphi 0, %s109
      %s131 = sphi 0, %s133
      %s134 = sphi 0, %s131
      %s135 = sphi 0, %s134
      %s151 = sphi 0, %s135
      %s157 = sphi 0, %s159
      %s160 = sphi 0, %s157
      %s161 = sphi 0, %s160
      %s177 = sphi 0, %s161
      %s183 = sphi 0, %s185
      %s186 = sphi 0, %s183
      %s187 = sphi 0, %s186
      %s203 = sphi 0, %s187
      %s209 = sphi 0, %s211
      %s212 = sphi 0, %s209
      %s213 = sphi 0, %s212
      %s229 = sphi 0, %s213
      %s235 = sphi 0, %s237
      %s238 = sphi 0, %s235
      %s239 = sphi 0, %s238
      %s255 = sphi 0, %s239
      %s261 = sphi 0, %s263
      %s264 = sphi 0, %s261
      %s265 = sphi 0, %s264
      %s281 = sphi 0, %s265
      %s287 = sphi 0, %s289
      %s290 = sphi 0, %s287
      %s291 = sphi 0, %s290
      %s307 = sphi 0, %s291
      %s313 = sphi 0, %s315
      %s316 = sphi 0, %s313
      %s317 = sphi 0, %s316
      %s333 = sphi 0, %s317
      %s339 = sphi 0, %s341
      %s342 = sphi 0, %s339
      %s343 = sphi 0, %s342
      %s359 = sphi 0, %s343
      %s365 = sphi 0, %s367
      %s368 = sphi 0, %s365
      %s369 = sphi 0, %s368
      %s385 = sphi 0, %s369
      %s391 = sphi 0, %s393
      %s394 = sphi 0, %s391
      %s395 = sphi 0, %s394
      %s411 = sphi 0, %s395
    $region4: #{tpu_custom_call.1} parent=1 // loop_header_branch
      %34 = sbr.rel (%p32) target = $region8
    $region5: #{tpu_custom_call.1} parent=1 // loop_body
      %s36 = ssub.s32 %s31, 1
      %s37 = ssub.s32 %s31, 2
      %s44 = sadd.s32 1, %s39
      %p45 = scmp.ge.s32.totalorder %s44, 2
      %s46 = scalar_select %p45, 0, %s44
      %s47 = sadd.s32 1, %s38
      %s48 = scalar_select %p45, %s47, %s38
      %p49 = scmp.ge.s32.totalorder %s48, 2
      %s50 = scalar_select %p49, 0, %s48
      %s51 = ssub.s32 %s38, %s50
      %p52 = scmp.eq.s32.totalorder %s51, 0
      %s54 = sadd.s32 %s53, 1
      %s55 = scalar_select %p52, %s53, %s54
      %p58 = pneg %p52
      %p59 = scmp.eq.s32.totalorder %s31, 3
      %p60 = por %p58, %p59
      %p61 = scmp.ne.s32.totalorder %s53, %s56
      %p62 = scmp.eq.s32.totalorder %s31, 0
      %p63 = por %p61, %p62
      %p64 = scmp.ne.s32.totalorder %s53, %s56
      %p65 = scmp.eq.s32.totalorder %s36, 3
      %p66 = por %p64, %p65
      %p67 = scmp.ne.s32.totalorder %s56, %s57
      %p68 = scmp.eq.s32.totalorder %s36, 0
      %p69 = por %p67, %p68
      %p70 = scmp.ne.s32.totalorder %s56, %s57
      %p71 = scmp.eq.s32.totalorder %s37, 3
      %p72 = por %p70, %p71
      %p74 = scmp.ne.s32.totalorder %s57, %s73
      %p75 = scmp.eq.s32.totalorder %s37, 0
      %p76 = por %p74, %p75
      %s77 = ssub.s32 %s39, %s46
      %p78 = scmp.eq.s32.totalorder %s77, 0
      %s80 = sadd.s32 %s79, 1
      %s81 = scalar_select %p78, %s79, %s80
      %p84 = pneg %p78
      %p85 = scmp.eq.s32.totalorder %s31, 3
      %p86 = por %p84, %p85
      %p87 = scmp.ne.s32.totalorder %s79, %s82
      %p88 = scmp.eq.s32.totalorder %s31, 0
      %p89 = por %p87, %p88
      %p90 = scmp.ne.s32.totalorder %s79, %s82
      %p91 = scmp.eq.s32.totalorder %s36, 3
      %p92 = por %p90, %p91
      %p93 = scmp.ne.s32.totalorder %s82, %s83
      %p94 = scmp.eq.s32.totalorder %s36, 0
      %p95 = por %p93, %p94
      %p96 = scmp.ne.s32.totalorder %s82, %s83
      %p97 = scmp.eq.s32.totalorder %s37, 3
      %p98 = por %p96, %p97
      %p100 = scmp.ne.s32.totalorder %s83, %s99
      %p101 = scmp.eq.s32.totalorder %s37, 0
      %p102 = por %p100, %p101
      %s103 = ssub.s32 %s39, %s46
      %p104 = scmp.eq.s32.totalorder %s103, 0
      %s106 = sadd.s32 %s105, 1
      %s107 = scalar_select %p104, %s105, %s106
      %p110 = pneg %p104
      %p111 = scmp.eq.s32.totalorder %s31, 3
      %p112 = por %p110, %p111
      %p113 = scmp.ne.s32.totalorder %s105, %s108
      %p114 = scmp.eq.s32.totalorder %s31, 0
      %p115 = por %p113, %p114
      %p116 = scmp.ne.s32.totalorder %s105, %s108
      %p117 = scmp.eq.s32.totalorder %s36, 3
      %p118 = por %p116, %p117
      %p119 = scmp.ne.s32.totalorder %s108, %s109
      %p120 = scmp.eq.s32.totalorder %s36, 0
      %p121 = por %p119, %p120
      %p122 = scmp.ne.s32.totalorder %s108, %s109
      %p123 = scmp.eq.s32.totalorder %s37, 3
      %p124 = por %p122, %p123
      %p126 = scmp.ne.s32.totalorder %s109, %s125
      %p127 = scmp.eq.s32.totalorder %s37, 0
      %p128 = por %p126, %p127
      %s129 = ssub.s32 %s39, %s46
      %p130 = scmp.eq.s32.totalorder %s129, 0
      %s132 = sadd.s32 %s131, 1
      %s133 = scalar_select %p130, %s131, %s132
      %p136 = pneg %p130
      %p137 = scmp.eq.s32.totalorder %s31, 3
      %p138 = por %p136, %p137
      %p139 = scmp.ne.s32.totalorder %s131, %s134
      %p140 = scmp.eq.s32.totalorder %s31, 0
      %p141 = por %p139, %p140
      %p142 = scmp.ne.s32.totalorder %s131, %s134
      %p143 = scmp.eq.s32.totalorder %s36, 3
      %p144 = por %p142, %p143
      %p145 = scmp.ne.s32.totalorder %s134, %s135
      %p146 = scmp.eq.s32.totalorder %s36, 0
      %p147 = por %p145, %p146
      %p148 = scmp.ne.s32.totalorder %s134, %s135
      %p149 = scmp.eq.s32.totalorder %s37, 3
      %p150 = por %p148, %p149
      %p152 = scmp.ne.s32.totalorder %s135, %s151
      %p153 = scmp.eq.s32.totalorder %s37, 0
      %p154 = por %p152, %p153
      %s155 = ssub.s32 %s39, %s46
      %p156 = scmp.eq.s32.totalorder %s155, 0
      %s158 = sadd.s32 %s157, 1
      %s159 = scalar_select %p156, %s157, %s158
      %p162 = pneg %p156
      %p163 = scmp.eq.s32.totalorder %s31, 3
      %p164 = por %p162, %p163
      %p165 = scmp.ne.s32.totalorder %s157, %s160
      %p166 = scmp.eq.s32.totalorder %s31, 0
      %p167 = por %p165, %p166
      %p168 = scmp.ne.s32.totalorder %s157, %s160
      %p169 = scmp.eq.s32.totalorder %s36, 3
      %p170 = por %p168, %p169
      %p171 = scmp.ne.s32.totalorder %s160, %s161
      %p172 = scmp.eq.s32.totalorder %s36, 0
      %p173 = por %p171, %p172
      %p174 = scmp.ne.s32.totalorder %s160, %s161
      %p175 = scmp.eq.s32.totalorder %s37, 3
      %p176 = por %p174, %p175
      %p178 = scmp.ne.s32.totalorder %s161, %s177
      %p179 = scmp.eq.s32.totalorder %s37, 0
      %p180 = por %p178, %p179
      %s181 = ssub.s32 %s39, %s46
      %p182 = scmp.eq.s32.totalorder %s181, 0
      %s184 = sadd.s32 %s183, 1
      %s185 = scalar_select %p182, %s183, %s184
      %p188 = pneg %p182
      %p189 = scmp.eq.s32.totalorder %s31, 3
      %p190 = por %p188, %p189
      %p191 = scmp.ne.s32.totalorder %s183, %s186
      %p192 = scmp.eq.s32.totalorder %s31, 0
      %p193 = por %p191, %p192
      %p194 = scmp.ne.s32.totalorder %s183, %s186
      %p195 = scmp.eq.s32.totalorder %s36, 3
      %p196 = por %p194, %p195
      %p197 = scmp.ne.s32.totalorder %s186, %s187
      %p198 = scmp.eq.s32.totalorder %s36, 0
      %p199 = por %p197, %p198
      %p200 = scmp.ne.s32.totalorder %s186, %s187
      %p201 = scmp.eq.s32.totalorder %s37, 3
      %p202 = por %p200, %p201
      %p204 = scmp.ne.s32.totalorder %s187, %s203
      %p205 = scmp.eq.s32.totalorder %s37, 0
      %p206 = por %p204, %p205
      %s207 = ssub.s32 %s39, %s46
      %p208 = scmp.eq.s32.totalorder %s207, 0
      %s210 = sadd.s32 %s209, 1
      %s211 = scalar_select %p208, %s209, %s210
      %p214 = pneg %p208
      %p215 = scmp.eq.s32.totalorder %s31, 3
      %p216 = por %p214, %p215
      %p217 = scmp.ne.s32.totalorder %s209, %s212
      %p218 = scmp.eq.s32.totalorder %s31, 0
      %p219 = por %p217, %p218
      %p220 = scmp.ne.s32.totalorder %s209, %s212
      %p221 = scmp.eq.s32.totalorder %s36, 3
      %p222 = por %p220, %p221
      %p223 = scmp.ne.s32.totalorder %s212, %s213
      %p224 = scmp.eq.s32.totalorder %s36, 0
      %p225 = por %p223, %p224
      %p226 = scmp.ne.s32.totalorder %s212, %s213
      %p227 = scmp.eq.s32.totalorder %s37, 3
      %p228 = por %p226, %p227
      %p230 = scmp.ne.s32.totalorder %s213, %s229
      %p231 = scmp.eq.s32.totalorder %s37, 0
      %p232 = por %p230, %p231
      %s233 = ssub.s32 %s39, %s46
      %p234 = scmp.eq.s32.totalorder %s233, 0
      %s236 = sadd.s32 %s235, 1
      %s237 = scalar_select %p234, %s235, %s236
      %p240 = pneg %p234
      %p241 = scmp.eq.s32.totalorder %s31, 3
      %p242 = por %p240, %p241
      %p243 = scmp.ne.s32.totalorder %s235, %s238
      %p244 = scmp.eq.s32.totalorder %s31, 0
      %p245 = por %p243, %p244
      %p246 = scmp.ne.s32.totalorder %s235, %s238
      %p247 = scmp.eq.s32.totalorder %s36, 3
      %p248 = por %p246, %p247
      %p249 = scmp.ne.s32.totalorder %s238, %s239
      %p250 = scmp.eq.s32.totalorder %s36, 0
      %p251 = por %p249, %p250
      %p252 = scmp.ne.s32.totalorder %s238, %s239
      %p253 = scmp.eq.s32.totalorder %s37, 3
      %p254 = por %p252, %p253
      %p256 = scmp.ne.s32.totalorder %s239, %s255
      %p257 = scmp.eq.s32.totalorder %s37, 0
      %p258 = por %p256, %p257
      %s259 = ssub.s32 %s39, %s46
      %p260 = scmp.eq.s32.totalorder %s259, 0
      %s262 = sadd.s32 %s261, 1
      %s263 = scalar_select %p260, %s261, %s262
      %p266 = pneg %p260
      %p267 = scmp.eq.s32.totalorder %s31, 3
      %p268 = por %p266, %p267
      %p269 = scmp.ne.s32.totalorder %s261, %s264
      %p270 = scmp.eq.s32.totalorder %s31, 0
      %p271 = por %p269, %p270
      %p272 = scmp.ne.s32.totalorder %s261, %s264
      %p273 = scmp.eq.s32.totalorder %s36, 3
      %p274 = por %p272, %p273
      %p275 = scmp.ne.s32.totalorder %s264, %s265
      %p276 = scmp.eq.s32.totalorder %s36, 0
      %p277 = por %p275, %p276
      %p278 = scmp.ne.s32.totalorder %s264, %s265
      %p279 = scmp.eq.s32.totalorder %s37, 3
      %p280 = por %p278, %p279
      %p282 = scmp.ne.s32.totalorder %s265, %s281
      %p283 = scmp.eq.s32.totalorder %s37, 0
      %p284 = por %p282, %p283
      %s285 = ssub.s32 %s39, %s46
      %p286 = scmp.eq.s32.totalorder %s285, 0
      %s288 = sadd.s32 %s287, 1
      %s289 = scalar_select %p286, %s287, %s288
      %p292 = pneg %p286
      %p293 = scmp.eq.s32.totalorder %s31, 3
      %p294 = por %p292, %p293
      %p295 = scmp.ne.s32.totalorder %s287, %s290
      %p296 = scmp.eq.s32.totalorder %s31, 0
      %p297 = por %p295, %p296
      %p298 = scmp.ne.s32.totalorder %s287, %s290
      %p299 = scmp.eq.s32.totalorder %s36, 3
      %p300 = por %p298, %p299
      %p301 = scmp.ne.s32.totalorder %s290, %s291
      %p302 = scmp.eq.s32.totalorder %s36, 0
      %p303 = por %p301, %p302
      %p304 = scmp.ne.s32.totalorder %s290, %s291
      %p305 = scmp.eq.s32.totalorder %s37, 3
      %p306 = por %p304, %p305
      %p308 = scmp.ne.s32.totalorder %s291, %s307
      %p309 = scmp.eq.s32.totalorder %s37, 0
      %p310 = por %p308, %p309
      %s311 = ssub.s32 %s39, %s46
      %p312 = scmp.eq.s32.totalorder %s311, 0
      %s314 = sadd.s32 %s313, 1
      %s315 = scalar_select %p312, %s313, %s314
      %p318 = pneg %p312
      %p319 = scmp.eq.s32.totalorder %s31, 3
      %p320 = por %p318, %p319
      %p321 = scmp.ne.s32.totalorder %s313, %s316
      %p322 = scmp.eq.s32.totalorder %s31, 0
      %p323 = por %p321, %p322
      %p324 = scmp.ne.s32.totalorder %s313, %s316
      %p325 = scmp.eq.s32.totalorder %s36, 3
      %p326 = por %p324, %p325
      %p327 = scmp.ne.s32.totalorder %s316, %s317
      %p328 = scmp.eq.s32.totalorder %s36, 0
      %p329 = por %p327, %p328
      %p330 = scmp.ne.s32.totalorder %s316, %s317
      %p331 = scmp.eq.s32.totalorder %s37, 3
      %p332 = por %p330, %p331
      %p334 = scmp.ne.s32.totalorder %s317, %s333
      %p335 = scmp.eq.s32.totalorder %s37, 0
      %p336 = por %p334, %p335
      %s337 = ssub.s32 %s39, %s46
      %p338 = scmp.eq.s32.totalorder %s337, 0
      %s340 = sadd.s32 %s339, 1
      %s341 = scalar_select %p338, %s339, %s340
      %p344 = pneg %p338
      %p345 = scmp.eq.s32.totalorder %s31, 3
      %p346 = por %p344, %p345
      %p347 = scmp.ne.s32.totalorder %s339, %s342
      %p348 = scmp.eq.s32.totalorder %s31, 0
      %p349 = por %p347, %p348
      %p350 = scmp.ne.s32.totalorder %s339, %s342
      %p351 = scmp.eq.s32.totalorder %s36, 3
      %p352 = por %p350, %p351
      %p353 = scmp.ne.s32.totalorder %s342, %s343
      %p354 = scmp.eq.s32.totalorder %s36, 0
      %p355 = por %p353, %p354
      %p356 = scmp.ne.s32.totalorder %s342, %s343
      %p357 = scmp.eq.s32.totalorder %s37, 3
      %p358 = por %p356, %p357
      %p360 = scmp.ne.s32.totalorder %s343, %s359
      %p361 = scmp.eq.s32.totalorder %s37, 0
      %p362 = por %p360, %p361
      %s363 = ssub.s32 %s39, %s46
      %p364 = scmp.eq.s32.totalorder %s363, 0
      %s366 = sadd.s32 %s365, 1
      %s367 = scalar_select %p364, %s365, %s366
      %p370 = pneg %p364
      %p371 = scmp.eq.s32.totalorder %s31, 3
      %p372 = por %p370, %p371
      %p373 = scmp.ne.s32.totalorder %s365, %s368
      %p374 = scmp.eq.s32.totalorder %s31, 0
      %p375 = por %p373, %p374
      %p376 = scmp.ne.s32.totalorder %s365, %s368
      %p377 = scmp.eq.s32.totalorder %s36, 3
      %p378 = por %p376, %p377
      %p379 = scmp.ne.s32.totalorder %s368, %s369
      %p380 = scmp.eq.s32.totalorder %s36, 0
      %p381 = por %p379, %p380
      %p382 = scmp.ne.s32.totalorder %s368, %s369
      %p383 = scmp.eq.s32.totalorder %s37, 3
      %p384 = por %p382, %p383
      %p386 = scmp.ne.s32.totalorder %s369, %s385
      %p387 = scmp.eq.s32.totalorder %s37, 0
      %p388 = por %p386, %p387
      %s389 = ssub.s32 %s38, %s50
      %p390 = scmp.eq.s32.totalorder %s389, 0
      %s392 = sadd.s32 %s391, 1
      %s393 = scalar_select %p390, %s391, %s392
      %p396 = pneg %p390
      %p397 = scmp.eq.s32.totalorder %s31, 3
      %p398 = por %p396, %p397
      %p399 = scmp.ne.s32.totalorder %s391, %s394
      %p400 = scmp.eq.s32.totalorder %s31, 0
      %p401 = por %p399, %p400
      %p402 = scmp.ne.s32.totalorder %s391, %s394
      %p403 = scmp.eq.s32.totalorder %s36, 3
      %p404 = por %p402, %p403
      %p405 = scmp.ne.s32.totalorder %s394, %s395
      %p406 = scmp.eq.s32.totalorder %s36, 0
      %p407 = por %p405, %p406
      %p408 = scmp.ne.s32.totalorder %s394, %s395
      %p409 = scmp.eq.s32.totalorder %s37, 3
      %p410 = por %p408, %p409
      %p412 = scmp.ne.s32.totalorder %s395, %s411
      %p413 = scmp.eq.s32.totalorder %s37, 0
      %p414 = por %p412, %p413
      %p415 = scmp.le.s32.totalorder 1, %s31
      %p416 = scmp.lt.s32.totalorder %s31, 5
      %p417 = pnand %p415, %p416
      %p418 = pneg %p417
      // Predicated region
      $region9: #{tpu_custom_call.1} parent=5 // pred_check
        _
      $region10: #{tpu_custom_call.1} parent=5 // pred_check_branch
        %420 = sbr.rel (%p417) target = $region12
      $region11: #{tpu_custom_call.1} parent=5 // pred_region
        %s421 = ssub.s32 %s31, 1
      $region12: #{tpu_custom_call.1} parent=5 // pred_fallthru
        _
      %p422 = scmp.lt.s32.totalorder %s31, 4
      // Predicated region
      $region13: #{tpu_custom_call.1} parent=5 // pred_check
        %p423 = pneg %p422
      $region14: #{tpu_custom_call.1} parent=5 // pred_check_branch
        %425 = sbr.rel (%p423) target = $region16
      $region15: #{tpu_custom_call.1} parent=5 // pred_region
        // Predicated region
        $region17: #{tpu_custom_call.1} parent=15 // pred_check
          %p426 = pneg %p63
        $region18: #{tpu_custom_call.1} parent=15 // pred_check_branch
          %428 = sbr.rel (%p426) target = $region20
        $region19: #{tpu_custom_call.1} parent=15 // pred_region
          %s429 = sand.u32 %s53, 1
          %s430 = scalar_lea.sflag [#allocation3], %s429
          %s431 = sand.u32 %s53, 1
          %s432 = smul.addr %s431, 8
          %s433 = scalar_lea.vmem [#allocation2], %s432
          %s435 = ssub.s32 128, 128
          %436 = vsyncadd %s430, %s435
          %s437 = smul.addr %s38, 128
          %s438 = scalar_lea.hbm %s0, %s437
          %s440 = sshll.u32 %s433, 4
          %s441 = int_to_ptr.vmem [resolvable:$true] %s440
          %443 = dma.hbm_to_vmem [thread:$0]  %s438, 128, %s441, %s430
        $region20: #{tpu_custom_call.1} parent=15 // pred_fallthru
          _
        // Predicated region
        $region21: #{tpu_custom_call.1} parent=15 // pred_check
          %p444 = pneg %p89
        $region22: #{tpu_custom_call.1} parent=15 // pred_check_branch
          %446 = sbr.rel (%p444) target = $region24
        $region23: #{tpu_custom_call.1} parent=15 // pred_region
          %p447 = scmp.lt.s32.totalorder %s39, 1
          %s448 = scalar_select %p447, %s39, 1
          %s449 = scalar_lea.vmem %s1, %s448
        $region24: #{tpu_custom_call.1} parent=15 // pred_fallthru
          _
        // Predicated region
        $region25: #{tpu_custom_call.1} parent=15 // pred_check
          %p450 = pneg %p115
        $region26: #{tpu_custom_call.1} parent=15 // pred_check_branch
          %452 = sbr.rel (%p450) target = $region28
        $region27: #{tpu_custom_call.1} parent=15 // pred_region
          %p453 = scmp.lt.s32.totalorder %s39, 1
          %s454 = scalar_select %p453, %s39, 1
          %s455 = scalar_lea.vmem %s2, %s454
        $region28: #{tpu_custom_call.1} parent=15 // pred_fallthru
          _
        // Predicated region
        $region29: #{tpu_custom_call.1} parent=15 // pred_check
          %p456 = pneg %p141
        $region30: #{tpu_custom_call.1} parent=15 // pred_check_branch
          %458 = sbr.rel (%p456) target = $region32
        $region31: #{tpu_custom_call.1} parent=15 // pred_region
          %p459 = scmp.lt.s32.totalorder %s39, 1
          %s460 = scalar_select %p459, %s39, 1
          %s461 = smul.addr %s460, 4
          %s462 = smul.addr %s461, 4
          %s463 = scalar_lea.vmem %s3, %s462
        $region32: #{tpu_custom_call.1} parent=15 // pred_fallthru
          _
        // Predicated region
        $region33: #{tpu_custom_call.1} parent=15 // pred_check
          %p464 = pneg %p167
        $region34: #{tpu_custom_call.1} parent=15 // pred_check_branch
          %466 = sbr.rel (%p464) target = $region36
        $region35: #{tpu_custom_call.1} parent=15 // pred_region
          %p467 = scmp.lt.s32.totalorder %s39, 1
          %s468 = scalar_select %p467, %s39, 1
          %s469 = scalar_lea.vmem %s4, %s468
        $region36: #{tpu_custom_call.1} parent=15 // pred_fallthru
          _
        // Predicated region
        $region37: #{tpu_custom_call.1} parent=15 // pred_check
          %p470 = pneg %p193
        $region38: #{tpu_custom_call.1} parent=15 // pred_check_branch
          %472 = sbr.rel (%p470) target = $region40
        $region39: #{tpu_custom_call.1} parent=15 // pred_region
          %p473 = scmp.lt.s32.totalorder %s39, 1
          %s474 = scalar_select %p473, %s39, 1
          %s475 = smul.addr %s474, 4
          %s476 = smul.addr %s475, 4
          %s477 = scalar_lea.vmem %s5, %s476
        $region40: #{tpu_custom_call.1} parent=15 // pred_fallthru
          _
        // Predicated region
        $region41: #{tpu_custom_call.1} parent=15 // pred_check
          %p478 = pneg %p219
        $region42: #{tpu_custom_call.1} parent=15 // pred_check_branch
          %480 = sbr.rel (%p478) target = $region44
        $region43: #{tpu_custom_call.1} parent=15 // pred_region
          %p481 = scmp.lt.s32.totalorder %s39, 1
          %s482 = scalar_select %p481, %s39, 1
          %s483 = scalar_lea.vmem %s6, %s482
        $region44: #{tpu_custom_call.1} parent=15 // pred_fallthru
          _
        // Predicated region
        $region45: #{tpu_custom_call.1} parent=15 // pred_check
          %p484 = pneg %p245
        $region46: #{tpu_custom_call.1} parent=15 // pred_check_branch
          %486 = sbr.rel (%p484) target = $region48
        $region47: #{tpu_custom_call.1} parent=15 // pred_region
          %s487 = sand.u32 %s31, 1
          %s488 = scalar_lea.sflag [#allocation6], %s487
          %s489 = sand.u32 %s235, 1
          %s490 = scalar_lea.vmem [#allocation5], %s489
          %s492 = ssub.s32 16, 16
          %493 = vsyncadd %s488, %s492
          %s494 = smul.addr %s39, 16
          %s495 = scalar_lea.hbm %s7, %s494
          %s497 = sshll.u32 %s490, 4
          %s498 = int_to_ptr.vmem [resolvable:$true] %s497
          %500 = dma.hbm_to_vmem [thread:$0]  %s495, 16, %s498, %s488
        $region48: #{tpu_custom_call.1} parent=15 // pred_fallthru
          _
        // Predicated region
        $region49: #{tpu_custom_call.1} parent=15 // pred_check
          %p501 = pneg %p271
        $region50: #{tpu_custom_call.1} parent=15 // pred_check_branch
          %503 = sbr.rel (%p501) target = $region52
        $region51: #{tpu_custom_call.1} parent=15 // pred_region
          %s504 = sand.u32 %s31, 1
          %s505 = scalar_lea.sflag [#allocation6], %s504
          %s506 = sand.u32 %s261, 1
          %s507 = scalar_lea.vmem [#allocation7], %s506
          %s509 = ssub.s32 16, 16
          %510 = vsyncadd %s505, %s509
          %s511 = smul.addr %s39, 16
          %s512 = scalar_lea.hbm %s8, %s511
          %s514 = sshll.u32 %s507, 4
          %s515 = int_to_ptr.vmem [resolvable:$true] %s514
          %517 = dma.hbm_to_vmem [thread:$0]  %s512, 16, %s515, %s505
        $region52: #{tpu_custom_call.1} parent=15 // pred_fallthru
          _
        // Predicated region
        $region53: #{tpu_custom_call.1} parent=15 // pred_check
          %p518 = pneg %p297
        $region54: #{tpu_custom_call.1} parent=15 // pred_check_branch
          %520 = sbr.rel (%p518) target = $region56
        $region55: #{tpu_custom_call.1} parent=15 // pred_region
          %p521 = scmp.lt.s32.totalorder %s39, 1
          %s522 = scalar_select %p521, %s39, 1
          %s523 = smul.addr %s522, 4
          %s524 = smul.addr %s523, 4
          %s525 = scalar_lea.vmem %s9, %s524
        $region56: #{tpu_custom_call.1} parent=15 // pred_fallthru
          _
        // Predicated region
        $region57: #{tpu_custom_call.1} parent=15 // pred_check
          %p526 = pneg %p323
        $region58: #{tpu_custom_call.1} parent=15 // pred_check_branch
          %528 = sbr.rel (%p526) target = $region60
        $region59: #{tpu_custom_call.1} parent=15 // pred_region
          %s529 = sand.u32 %s313, 1
          %s530 = scalar_lea.sflag [#allocation9], %s529
          %s531 = sand.u32 %s313, 1
          %s532 = scalar_lea.vmem [#allocation8], %s531
          %s534 = ssub.s32 16, 16
          %535 = vsyncadd %s530, %s534
          %s536 = smul.addr %s39, 16
          %s537 = scalar_lea.hbm %s10, %s536
          %s539 = sshll.u32 %s532, 4
          %s540 = int_to_ptr.vmem [resolvable:$true] %s539
          %542 = dma.hbm_to_vmem [thread:$0]  %s537, 16, %s540, %s530
        $region60: #{tpu_custom_call.1} parent=15 // pred_fallthru
          _
        // Predicated region
        $region61: #{tpu_custom_call.1} parent=15 // pred_check
          %p543 = pneg %p349
        $region62: #{tpu_custom_call.1} parent=15 // pred_check_branch
          %545 = sbr.rel (%p543) target = $region64
        $region63: #{tpu_custom_call.1} parent=15 // pred_region
          %p546 = scmp.lt.s32.totalorder %s39, 1
          %s547 = scalar_select %p546, %s39, 1
          %s548 = smul.addr %s547, 8
          %s549 = smul.addr %s548, 4
          %s550 = scalar_lea.vmem %s11, %s549
        $region64: #{tpu_custom_call.1} parent=15 // pred_fallthru
          _
        // Predicated region
        $region65: #{tpu_custom_call.1} parent=15 // pred_check
          %p551 = pneg %p375
        $region66: #{tpu_custom_call.1} parent=15 // pred_check_branch
          %553 = sbr.rel (%p551) target = $region68
        $region67: #{tpu_custom_call.1} parent=15 // pred_region
          %p554 = scmp.lt.s32.totalorder %s39, 1
          %s555 = scalar_select %p554, %s39, 1
          %s556 = scalar_lea.vmem %s12, %s555
        $region68: #{tpu_custom_call.1} parent=15 // pred_fallthru
          _
      $region16: #{tpu_custom_call.1} parent=5 // pred_fallthru
        _
      %p557 = scmp.le.s32.totalorder 1, %s31
      %p558 = scmp.lt.s32.totalorder %s31, 5
      %p559 = pnand %p557, %p558
      %p560 = pneg %p559
      // Predicated region
      $region69: #{tpu_custom_call.1} parent=5 // pred_check
        _
      $region70: #{tpu_custom_call.1} parent=5 // pred_check_branch
        %562 = sbr.rel (%p559) target = $region72
      $region71: #{tpu_custom_call.1} parent=5 // pred_region
        %s563 = ssub.s32 %s31, 1
        %s564 = sand.u32 %s56, 1
        %s565 = scalar_lea.sflag [#allocation3], %s564
        %s566 = sand.u32 %s56, 1
        %s567 = smul.addr %s566, 8
        %s568 = scalar_lea.vmem [#allocation2], %s567
        // Predicated region
        $region73: #{tpu_custom_call.1} parent=71 // pred_check
          %p569 = pneg %p69
        $region74: #{tpu_custom_call.1} parent=71 // pred_check_branch
          %571 = sbr.rel (%p569) target = $region76
        $region75: #{tpu_custom_call.1} parent=71 // pred_region
          %572 = dma.done %s565, 128
        $region76: #{tpu_custom_call.1} parent=71 // pred_fallthru
          _
        %s573 = sand.u32 %s36, 1
        %s574 = scalar_lea.sflag [#allocation6], %s573
        %s575 = sand.u32 %s238, 1
        %s576 = scalar_lea.vmem [#allocation5], %s575
        // Predicated region
        $region77: #{tpu_custom_call.1} parent=71 // pred_check
          %p577 = pneg %p251
        $region78: #{tpu_custom_call.1} parent=71 // pred_check_branch
          %579 = sbr.rel (%p577) target = $region80
        $region79: #{tpu_custom_call.1} parent=71 // pred_region
          %580 = dma.done %s574, 16
        $region80: #{tpu_custom_call.1} parent=71 // pred_fallthru
          _
        %s581 = sand.u32 %s36, 1
        %s582 = scalar_lea.sflag [#allocation6], %s581
        %s583 = sand.u32 %s264, 1
        %s584 = scalar_lea.vmem [#allocation7], %s583
        // Predicated region
        $region81: #{tpu_custom_call.1} parent=71 // pred_check
          %p585 = pneg %p277
        $region82: #{tpu_custom_call.1} parent=71 // pred_check_branch
          %587 = sbr.rel (%p585) target = $region84
        $region83: #{tpu_custom_call.1} parent=71 // pred_region
          %588 = dma.done %s582, 16
        $region84: #{tpu_custom_call.1} parent=71 // pred_fallthru
          _
        %s589 = sand.u32 %s316, 1
        %s590 = scalar_lea.sflag [#allocation9], %s589
        %s591 = sand.u32 %s316, 1
        %s592 = scalar_lea.vmem [#allocation8], %s591
        // Predicated region
        $region85: #{tpu_custom_call.1} parent=71 // pred_check
          %p593 = pneg %p329
        $region86: #{tpu_custom_call.1} parent=71 // pred_check_branch
          %595 = sbr.rel (%p593) target = $region88
        $region87: #{tpu_custom_call.1} parent=71 // pred_region
          %596 = dma.done %s590, 16
        $region88: #{tpu_custom_call.1} parent=71 // pred_fallthru
          _
        %s597 = sand.u32 %s56, 1
        %s598 = scalar_lea.sflag [#allocation3], %s597
        %s599 = sand.u32 %s56, 1
        %s600 = smul.addr %s599, 8
        %s601 = scalar_lea.vmem [#allocation2], %s600
        %p602 = pneg %p69
        %p603 = pneg %p66
        %p604 = scmp.lt.s32.totalorder %s41, 1
        %s605 = scalar_select %p604, %s41, 1
        %s606 = scalar_lea.vmem %s1, %s605
        %p607 = pneg %p95
        %p608 = pneg %p92
        %p609 = scmp.lt.s32.totalorder %s41, 1
        %s610 = scalar_select %p609, %s41, 1
        %s611 = scalar_lea.vmem %s2, %s610
        %p612 = pneg %p121
        %p613 = pneg %p118
        %p614 = scmp.lt.s32.totalorder %s41, 1
        %s615 = scalar_select %p614, %s41, 1
        %s616 = smul.addr %s615, 4
        %s617 = smul.addr %s616, 4
        %s618 = scalar_lea.vmem %s3, %s617
        %p619 = pneg %p147
        %p620 = pneg %p144
        %p621 = scmp.lt.s32.totalorder %s41, 1
        %s622 = scalar_select %p621, %s41, 1
        %s623 = scalar_lea.vmem %s4, %s622
        %p624 = pneg %p173
        %p625 = pneg %p170
        %p626 = scmp.lt.s32.totalorder %s41, 1
        %s627 = scalar_select %p626, %s41, 1
        %s628 = smul.addr %s627, 4
        %s629 = smul.addr %s628, 4
        %s630 = scalar_lea.vmem %s5, %s629
        %p631 = pneg %p199
        %p632 = pneg %p196
        %p633 = scmp.lt.s32.totalorder %s41, 1
        %s634 = scalar_select %p633, %s41, 1
        %s635 = scalar_lea.vmem %s6, %s634
        %p636 = pneg %p225
        %p637 = pneg %p222
        %s638 = sand.u32 %s36, 1
        %s639 = scalar_lea.sflag [#allocation6], %s638
        %s640 = sand.u32 %s238, 1
        %s641 = scalar_lea.vmem [#allocation5], %s640
        %p642 = pneg %p251
        %p643 = pneg %p248
        %s644 = sand.u32 %s36, 1
        %s645 = scalar_lea.sflag [#allocation6], %s644
        %s646 = sand.u32 %s264, 1
        %s647 = scalar_lea.vmem [#allocation7], %s646
        %p648 = pneg %p277
        %p649 = pneg %p274
        %p650 = scmp.lt.s32.totalorder %s41, 1
        %s651 = scalar_select %p650, %s41, 1
        %s652 = smul.addr %s651, 4
        %s653 = smul.addr %s652, 4
        %s654 = scalar_lea.vmem %s9, %s653
        %p655 = pneg %p303
        %p656 = pneg %p300
        %s657 = sand.u32 %s316, 1
        %s658 = scalar_lea.sflag [#allocation9], %s657
        %s659 = sand.u32 %s316, 1
        %s660 = scalar_lea.vmem [#allocation8], %s659
        %p661 = pneg %p329
        %p662 = pneg %p326
        %p663 = scmp.lt.s32.totalorder %s41, 1
        %s664 = scalar_select %p663, %s41, 1
        %s665 = smul.addr %s664, 8
        %s666 = smul.addr %s665, 4
        %s667 = scalar_lea.vmem %s11, %s666
        %p668 = pneg %p355
        %p669 = pneg %p352
        %p670 = scmp.lt.s32.totalorder %s41, 1
        %s671 = scalar_select %p670, %s41, 1
        %s672 = scalar_lea.vmem %s12, %s671
        %p673 = pneg %p381
        %p674 = pneg %p378
        %p675 = pneg %p407
        %p676 = pneg %p404
        %s677 = sand.u32 %s394, 1
        %s678 = scalar_lea.sflag [#allocation4], %s677
        %s679 = sand.u32 %s394, 1
        %s680 = smul.addr %s679, 8
        %s681 = scalar_lea.vmem [#allocation10], %s680
        %p682 = scmp.lt.s32.totalorder %s41, 1
        %s683 = scalar_select %p682, %s41, 1
        %s684 = scalar_lea.vmem %s1, %s683
        %p685 = scmp.lt.s32.totalorder %s41, 1
        %s686 = scalar_select %p685, %s41, 1
        %s687 = scalar_lea.vmem %s2, %s686
        %p688 = scmp.lt.s32.totalorder %s41, 1
        %s689 = scalar_select %p688, %s41, 1
        %s690 = smul.addr %s689, 4
        %s691 = smul.addr %s690, 4
        %s692 = scalar_lea.vmem %s3, %s691
        %p693 = scmp.lt.s32.totalorder %s41, 1
        %s694 = scalar_select %p693, %s41, 1
        %s695 = scalar_lea.vmem %s4, %s694
        %p696 = scmp.lt.s32.totalorder %s41, 1
        %s697 = scalar_select %p696, %s41, 1
        %s698 = smul.addr %s697, 4
        %s699 = smul.addr %s698, 4
        %s700 = scalar_lea.vmem %s5, %s699
        %p701 = scmp.lt.s32.totalorder %s41, 1
        %s702 = scalar_select %p701, %s41, 1
        %s703 = scalar_lea.vmem %s6, %s702
        %p704 = scmp.lt.s32.totalorder %s41, 1
        %s705 = scalar_select %p704, %s41, 1
        %s706 = smul.addr %s705, 4
        %s707 = smul.addr %s706, 4
        %s708 = scalar_lea.vmem %s9, %s707
        %p709 = scmp.lt.s32.totalorder %s41, 1
        %s710 = scalar_select %p709, %s41, 1
        %s711 = smul.addr %s710, 8
        %s712 = smul.addr %s711, 4
        %s713 = scalar_lea.vmem %s11, %s712
        %p714 = scmp.lt.s32.totalorder %s41, 1
        %s715 = scalar_select %p714, %s41, 1
        %s716 = scalar_lea.vmem %s12, %s715
        %p718 = scmp.eq.s32.totalorder %s41, 0
        // Predicated region
        $region89: #{tpu_custom_call.1} parent=71 // pred_check
          %p719 = pneg %p718
        $region90: #{tpu_custom_call.1} parent=71 // pred_check_branch
          %721 = sbr.rel (%p719) target = $region92
        $region91: #{tpu_custom_call.1} parent=71 // pred_region
          %v722 = vld [vmem:[%s568] sm:$0xff]
          %vm723 = vcmask 261120
          %724 = vst.msk [vmem:[%s681] sm:$0xff] %vm723, %v722
        $region92: #{tpu_custom_call.1} parent=71 // pred_fallthru
          _
        %v725 = vld [vmem:[%s681] sm:$0xff]
        %v726 = vld [vmem:[%s684] sm:$0x1]
        %v727 = vld [vmem:[%s687] sm:$0x1]
        %vm728 = vcmask 261120
        %v729 = vsel %vm728, %v725, 0.0
        %730 = vadd.xlane.f32.xlu0 %v729
        %v731 = vpop.xlane.xlu0 %730
        %v732 = vrcp.pop 32.0
        %v733 = vmul.f32 %v731, %v732
        %v734 = vsub.f32 %v725, %v733
        %v735 = vmul.f32 %v734, %v734
        %v736 = vsel %vm728, %v735, 0.0
        %737 = vadd.xlane.f32.xlu0 %v736
        %v738 = vpop.xlane.xlu0 %737
        %v739 = vmul.f32 %v738, %v732
        %v740 = vadd.f32 %v739, 1e-05
        %v741 = vrsqrt.pop %v740
        %v742 = vmul.f32 %v734, %v741
        %v744 = vlaneseq
        %v745 = vshrl.u32 %v744, 7
        %v746 = vsub.s32 0, %v745
        %v747 = vrot.slane %v726, %v746
        %v749 = vmul.f32 %v742, %v747
        %v751 = vlaneseq
        %v752 = vshrl.u32 %v751, 7
        %v753 = vsub.s32 0, %v752
        %v754 = vrot.slane %v727, %v753
        %v756 = vadd.f32 %v749, %v754
        %v757 = vpack.c.bf16 %v756, %v756
        %v758 = vld [vmem:[%s692] sm:$0xf]
        %v759 = vld [vmem:[%s692 + $0x4] sm:$0xf]
        %v760 = vld [vmem:[%s692 + $0x8] sm:$0xf]
        %v761 = vld [vmem:[%s692 + $0xc] sm:$0xf]
        %v762 = vld [vmem:[%s695] sm:$0x1]
        %v764 = vlaneseq
        %v765 = vshrl.u32 %v764, 7
        %v766 = vsub.s32 0, %v765
        %v767 = vrot.slane %v762, %v766
        %v773 = vunpack.c.l.b16 %v758
        %v774 = vunpack.c.l.b16 %v759
        %v775 = vunpack.c.l.b16 %v760
        %v776 = vunpack.c.l.b16 %v761
        %v777 = vpack.c.b16 %v774, %v773
        %v778 = vpack.c.b16 %v776, %v775
        %v782 = vsel %vm728, %v757, 0
        %784 = vmatprep.subr.bf16.mxu0 0
        %785 = vmatpush1.bf16.msra.mxu0 %v777
        %786 = vmatprep.subr.bf16.mxu0 0
        %787 = vmatpush1.bf16.msra.mxu0 %v778
        %788 = vmatprep.subr.bf16.mxu0 0
        %789 = vmatpush1.bf16.msra.mxu0 0
        %790 = vmatprep.subr.bf16.mxu0 0
        %791 = vmatpush1.bf16.msra.mxu0 0
        %792 = vmatprep.subr.bf16.mxu0 0
        %793 = vmatpush1.bf16.msra.mxu0 0
        %794 = vmatprep.subr.bf16.mxu0 0
        %795 = vmatpush1.bf16.msra.mxu0 0
        %796 = vmatprep.subr.bf16.mxu0 0
        %797 = vmatpush1.bf16.msra.mxu0 0
        %798 = vmatprep.subr.bf16.mxu0 0
        %799 = vmatpush1.bf16.msra.mxu0 0
        %800 = vmatprep.subr.bf16.mxu0 0
        %801 = vmatpush1.bf16.msra.mxu0 0
        %802 = vmatprep.subr.bf16.mxu0 0
        %803 = vmatpush1.bf16.msra.mxu0 0
        %804 = vmatprep.subr.bf16.mxu0 0
        %805 = vmatpush1.bf16.msra.mxu0 0
        %806 = vmatprep.subr.bf16.mxu0 0
        %807 = vmatpush1.bf16.msra.mxu0 0
        %808 = vmatprep.subr.bf16.mxu0 0
        %809 = vmatpush1.bf16.msra.mxu0 0
        %810 = vmatprep.subr.bf16.mxu0 0
        %811 = vmatpush1.bf16.msra.mxu0 0
        %812 = vmatprep.subr.bf16.mxu0 0
        %813 = vmatpush1.bf16.msra.mxu0 0
        %814 = vmatprep.subr.bf16.mxu0 0
        %815 = vmatpush1.bf16.msra.mxu0 0
        %816 = vmatprep.mubr.bf16.mxu0 0
        %817 = vmatmul.mubr.bf16.gmra.mrb[0].mxu0 %v782
        %v818 = vpop.f32.mrb[0].mxu0
        %v819 = vadd.f32 %v767, %v818
        %v820 = vpop.f32.mrb[0].mxu0
        %v821 = vpop.f32.mrb[0].mxu0
        %v822 = vpop.f32.mrb[0].mxu0
        %823 = vdwg.mxu0
        %v824 = vpack.c.bf16 %v819, %v819
        %826 = vrot.lane.b32.xlu0 %v824, 96
        %v827 = vpop.permute.xlu0 %826
        %vm828 = vcmask 64512
        %v830 = vsel %vm828, %v824, 0
        %v833 = vsel %vm828, %v827, 0
        %835 = vmatprep.subr.bf16.mxu0 0
        %836 = vmatpush1.bf16.xpose.msra.mxu0 %v833
        %837 = vmatprep.subr.bf16.mxu0 0
        %838 = vmatpush1.bf16.xpose.msra.mxu0 0
        %839 = vmatprep.subr.bf16.mxu0 0
        %840 = vmatpush1.bf16.xpose.msra.mxu0 0
        %841 = vmatprep.subr.bf16.mxu0 0
        %842 = vmatpush1.bf16.xpose.msra.mxu0 0
        %843 = vmatprep.subr.bf16.mxu0 0
        %844 = vmatpush1.bf16.xpose.msra.mxu0 0
        %845 = vmatprep.subr.bf16.mxu0 0
        %846 = vmatpush1.bf16.xpose.msra.mxu0 0
        %847 = vmatprep.subr.bf16.mxu0 0
        %848 = vmatpush1.bf16.xpose.msra.mxu0 0
        %849 = vmatprep.subr.bf16.mxu0 0
        %850 = vmatpush1.bf16.xpose.msra.mxu0 0
        %851 = vmatprep.subr.bf16.mxu0 0
        %852 = vmatpush1.bf16.xpose.msra.mxu0 0
        %853 = vmatprep.subr.bf16.mxu0 0
        %854 = vmatpush1.bf16.xpose.msra.mxu0 0
        %855 = vmatprep.subr.bf16.mxu0 0
        %856 = vmatpush1.bf16.xpose.msra.mxu0 0
        %857 = vmatprep.subr.bf16.mxu0 0
        %858 = vmatpush1.bf16.xpose.msra.mxu0 0
        %859 = vmatprep.subr.bf16.mxu0 0
        %860 = vmatpush1.bf16.xpose.msra.mxu0 0
        %861 = vmatprep.subr.bf16.mxu0 0
        %862 = vmatpush1.bf16.xpose.msra.mxu0 0
        %863 = vmatprep.subr.bf16.mxu0 0
        %864 = vmatpush1.bf16.xpose.msra.mxu0 0
        %865 = vmatprep.subr.bf16.mxu0 0
        %866 = vmatpush1.bf16.xpose.msra.mxu0 0
        %867 = vmatprep.mubr.bf16.mxu0 0
        %868 = vmatmul.mubr.bf16.gmra.mrb[0].mxu0 %v830
        %v869 = vpop.f32.mrb[0].mxu0
        %v870 = vadd.f32 0.0, %v869
        %v871 = vpop.f32.mrb[0].mxu0
        %v872 = vpop.f32.mrb[0].mxu0
        %v873 = vpop.f32.mrb[0].mxu0
        %874 = vdwg.mxu0
        %v875 = vsel %vm828, %v870, -inf
        %876 = vmax.xlane.f32.xlu0 %v875
        %v877 = vpop.xlane.xlu0 %876
        %v878 = vsub.f32 %v870, %v877
        %v879 = vmul.f32 %v878, 1.442695
        %v880 = vpow.pop %v879
        %v881 = vsel %vm828, %v880, 0.0
        %882 = vadd.xlane.f32.xlu0 %v881
        %v883 = vpop.xlane.xlu0 %882
        %v884 = vrcp.pop %v883
        %v885 = vmul.f32 %v880, %v884
        %v886 = vpack.c.bf16 %v885, %v885
        %887 = vrot.lane.b32.xlu0 %v824, 64
        %v888 = vpop.permute.xlu0 %887
        %v890 = vsel %vm828, %v886, 0
        %vm892 = vcmask 1043456
        %v894 = vsel %vm892, %v888, 0
        %896 = vmatprep.subr.bf16.mxu0 0
        %897 = vmatpush1.bf16.msra.mxu0 %v894
        %898 = vmatprep.subr.bf16.mxu0 0
        %899 = vmatpush1.bf16.msra.mxu0 0
        %900 = vmatprep.subr.bf16.mxu0 0
        %901 = vmatpush1.bf16.msra.mxu0 0
        %902 = vmatprep.subr.bf16.mxu0 0
        %903 = vmatpush1.bf16.msra.mxu0 0
        %904 = vmatprep.subr.bf16.mxu0 0
        %905 = vmatpush1.bf16.msra.mxu0 0
        %906 = vmatprep.subr.bf16.mxu0 0
        %907 = vmatpush1.bf16.msra.mxu0 0
        %908 = vmatprep.subr.bf16.mxu0 0
        %909 = vmatpush1.bf16.msra.mxu0 0
        %910 = vmatprep.subr.bf16.mxu0 0
        %911 = vmatpush1.bf16.msra.mxu0 0
        %912 = vmatprep.subr.bf16.mxu0 0
        %913 = vmatpush1.bf16.msra.mxu0 0
        %914 = vmatprep.subr.bf16.mxu0 0
        %915 = vmatpush1.bf16.msra.mxu0 0
        %916 = vmatprep.subr.bf16.mxu0 0
        %917 = vmatpush1.bf16.msra.mxu0 0
        %918 = vmatprep.subr.bf16.mxu0 0
        %919 = vmatpush1.bf16.msra.mxu0 0
        %920 = vmatprep.subr.bf16.mxu0 0
        %921 = vmatpush1.bf16.msra.mxu0 0
        %922 = vmatprep.subr.bf16.mxu0 0
        %923 = vmatpush1.bf16.msra.mxu0 0
        %924 = vmatprep.subr.bf16.mxu0 0
        %925 = vmatpush1.bf16.msra.mxu0 0
        %926 = vmatprep.subr.bf16.mxu0 0
        %927 = vmatpush1.bf16.msra.mxu0 0
        %928 = vmatprep.mubr.bf16.mxu0 0
        %929 = vmatmul.mubr.bf16.gmra.mrb[0].mxu0 %v890
        %v930 = vpop.f32.mrb[0].mxu0
        %v931 = vadd.f32 0.0, %v930
        %v932 = vpop.f32.mrb[0].mxu0
        %v933 = vpop.f32.mrb[0].mxu0
        %v934 = vpop.f32.mrb[0].mxu0
        %935 = vdwg.mxu0
        %936 = vrot.lane.b32.xlu0 %v824, 120
        %v937 = vpop.permute.xlu0 %936
        %938 = vrot.lane.b32.xlu0 %v824, 88
        %v939 = vpop.permute.xlu0 %938
        %v941 = vsel %vm828, %v937, 0
        %v944 = vsel %vm828, %v939, 0
        %946 = vmatprep.subr.bf16.mxu0 0
        %947 = vmatpush1.bf16.xpose.msra.mxu0 %v944
        %948 = vmatprep.subr.bf16.mxu0 0
        %949 = vmatpush1.bf16.xpose.msra.mxu0 0
        %950 = vmatprep.subr.bf16.mxu0 0
        %951 = vmatpush1.bf16.xpose.msra.mxu0 0
        %952 = vmatprep.subr.bf16.mxu0 0
        %953 = vmatpush1.bf16.xpose.msra.mxu0 0
        %954 = vmatprep.subr.bf16.mxu0 0
        %955 = vmatpush1.bf16.xpose.msra.mxu0 0
        %956 = vmatprep.subr.bf16.mxu0 0
        %957 = vmatpush1.bf16.xpose.msra.mxu0 0
        %958 = vmatprep.subr.bf16.mxu0 0
        %959 = vmatpush1.bf16.xpose.msra.mxu0 0
        %960 = vmatprep.subr.bf16.mxu0 0
        %961 = vmatpush1.bf16.xpose.msra.mxu0 0
        %962 = vmatprep.subr.bf16.mxu0 0
        %963 = vmatpush1.bf16.xpose.msra.mxu0 0
        %964 = vmatprep.subr.bf16.mxu0 0
        %965 = vmatpush1.bf16.xpose.msra.mxu0 0
        %966 = vmatprep.subr.bf16.mxu0 0
        %967 = vmatpush1.bf16.xpose.msra.mxu0 0
        %968 = vmatprep.subr.bf16.mxu0 0
        %969 = vmatpush1.bf16.xpose.msra.mxu0 0
        %970 = vmatprep.subr.bf16.mxu0 0
        %971 = vmatpush1.bf16.xpose.msra.mxu0 0
        %972 = vmatprep.subr.bf16.mxu0 0
        %973 = vmatpush1.bf16.xpose.msra.mxu0 0
        %974 = vmatprep.subr.bf16.mxu0 0
        %975 = vmatpush1.bf16.xpose.msra.mxu0 0
        %976 = vmatprep.subr.bf16.mxu0 0
        %977 = vmatpush1.bf16.xpose.msra.mxu0 0
        %978 = vmatprep.mubr.bf16.mxu0 0
        %979 = vmatmul.mubr.bf16.gmra.mrb[0].mxu0 %v941
        %v980 = vpop.f32.mrb[0].mxu0
        %v981 = vadd.f32 0.0, %v980
        %v982 = vpop.f32.mrb[0].mxu0
        %v983 = vpop.f32.mrb[0].mxu0
        %v984 = vpop.f32.mrb[0].mxu0
        %985 = vdwg.mxu0
        %v986 = vsel %vm828, %v981, -inf
        %987 = vmax.xlane.f32.xlu0 %v986
        %v988 = vpop.xlane.xlu0 %987
        %v989 = vsub.f32 %v981, %v988
        %v990 = vmul.f32 %v989, 1.442695
        %v991 = vpow.pop %v990
        %v992 = vsel %vm828, %v991, 0.0
        %993 = vadd.xlane.f32.xlu0 %v992
        %v994 = vpop.xlane.xlu0 %993
        %v995 = vrcp.pop %v994
        %v996 = vmul.f32 %v991, %v995
        %v997 = vpack.c.bf16 %v996, %v996
        %998 = vrot.lane.b32.xlu0 %v824, 56
        %v999 = vpop.permute.xlu0 %998
        %v1001 = vsel %vm828, %v997, 0
        %v1004 = vsel %vm892, %v999, 0
        %1006 = vmatprep.subr.bf16.mxu0 0
        %1007 = vmatpush1.bf16.msra.mxu0 %v1004
        %1008 = vmatprep.subr.bf16.mxu0 0
        %1009 = vmatpush1.bf16.msra.mxu0 0
        %1010 = vmatprep.subr.bf16.mxu0 0
        %1011 = vmatpush1.bf16.msra.mxu0 0
        %1012 = vmatprep.subr.bf16.mxu0 0
        %1013 = vmatpush1.bf16.msra.mxu0 0
        %1014 = vmatprep.subr.bf16.mxu0 0
        %1015 = vmatpush1.bf16.msra.mxu0 0
        %1016 = vmatprep.subr.bf16.mxu0 0
        %1017 = vmatpush1.bf16.msra.mxu0 0
        %1018 = vmatprep.subr.bf16.mxu0 0
        %1019 = vmatpush1.bf16.msra.mxu0 0
        %1020 = vmatprep.subr.bf16.mxu0 0
        %1021 = vmatpush1.bf16.msra.mxu0 0
        %1022 = vmatprep.subr.bf16.mxu0 0
        %1023 = vmatpush1.bf16.msra.mxu0 0
        %1024 = vmatprep.subr.bf16.mxu0 0
        %1025 = vmatpush1.bf16.msra.mxu0 0
        %1026 = vmatprep.subr.bf16.mxu0 0
        %1027 = vmatpush1.bf16.msra.mxu0 0
        %1028 = vmatprep.subr.bf16.mxu0 0
        %1029 = vmatpush1.bf16.msra.mxu0 0
        %1030 = vmatprep.subr.bf16.mxu0 0
        %1031 = vmatpush1.bf16.msra.mxu0 0
        %1032 = vmatprep.subr.bf16.mxu0 0
        %1033 = vmatpush1.bf16.msra.mxu0 0
        %1034 = vmatprep.subr.bf16.mxu0 0
        %1035 = vmatpush1.bf16.msra.mxu0 0
        %1036 = vmatprep.subr.bf16.mxu0 0
        %1037 = vmatpush1.bf16.msra.mxu0 0
        %1038 = vmatprep.mubr.bf16.mxu0 0
        %1039 = vmatmul.mubr.bf16.gmra.mrb[0].mxu0 %v1001
        %v1040 = vpop.f32.mrb[0].mxu0
        %v1041 = vadd.f32 0.0, %v1040
        %v1042 = vpop.f32.mrb[0].mxu0
        %v1043 = vpop.f32.mrb[0].mxu0
        %v1044 = vpop.f32.mrb[0].mxu0
        %1045 = vdwg.mxu0
        %1046 = vrot.lane.b32.xlu0 %v824, 112
        %v1047 = vpop.permute.xlu0 %1046
        %1048 = vrot.lane.b32.xlu0 %v824, 80
        %v1049 = vpop.permute.xlu0 %1048
        %v1051 = vsel %vm828, %v1047, 0
        %v1054 = vsel %vm828, %v1049, 0
        %1056 = vmatprep.subr.bf16.mxu0 0
        %1057 = vmatpush1.bf16.xpose.msra.mxu0 %v1054
        %1058 = vmatprep.subr.bf16.mxu0 0
        %1059 = vmatpush1.bf16.xpose.msra.mxu0 0
        %1060 = vmatprep.subr.bf16.mxu0 0
        %1061 = vmatpush1.bf16.xpose.msra.mxu0 0
        %1062 = vmatprep.subr.bf16.mxu0 0
        %1063 = vmatpush1.bf16.xpose.msra.mxu0 0
        %1064 = vmatprep.subr.bf16.mxu0 0
        %1065 = vmatpush1.bf16.xpose.msra.mxu0 0
        %1066 = vmatprep.subr.bf16.mxu0 0
        %1067 = vmatpush1.bf16.xpose.msra.mxu0 0
        %1068 = vmatprep.subr.bf16.mxu0 0
        %1069 = vmatpush1.bf16.xpose.msra.mxu0 0
        %1070 = vmatprep.subr.bf16.mxu0 0
        %1071 = vmatpush1.bf16.xpose.msra.mxu0 0
        %1072 = vmatprep.subr.bf16.mxu0 0
        %1073 = vmatpush1.bf16.xpose.msra.mxu0 0
        %1074 = vmatprep.subr.bf16.mxu0 0
        %1075 = vmatpush1.bf16.xpose.msra.mxu0 0
        %1076 = vmatprep.subr.bf16.mxu0 0
        %1077 = vmatpush1.bf16.xpose.msra.mxu0 0
        %1078 = vmatprep.subr.bf16.mxu0 0
        %1079 = vmatpush1.bf16.xpose.msra.mxu0 0
        %1080 = vmatprep.subr.bf16.mxu0 0
        %1081 = vmatpush1.bf16.xpose.msra.mxu0 0
        %1082 = vmatprep.subr.bf16.mxu0 0
        %1083 = vmatpush1.bf16.xpose.msra.mxu0 0
        %1084 = vmatprep.subr.bf16.mxu0 0
        %1085 = vmatpush1.bf16.xpose.msra.mxu0 0
        %1086 = vmatprep.subr.bf16.mxu0 0
        %1087 = vmatpush1.bf16.xpose.msra.mxu0 0
        %1088 = vmatprep.mubr.bf16.mxu0 0
        %1089 = vmatmul.mubr.bf16.gmra.mrb[0].mxu0 %v1051
        %v1090 = vpop.f32.mrb[0].mxu0
        %v1091 = vadd.f32 0.0, %v1090
        %v1092 = vpop.f32.mrb[0].mxu0
        %v1093 = vpop.f32.mrb[0].mxu0
        %v1094 = vpop.f32.mrb[0].mxu0
        %1095 = vdwg.mxu0
        %v1096 = vsel %vm828, %v1091, -inf
        %1097 = vmax.xlane.f32.xlu0 %v1096
        %v1098 = vpop.xlane.xlu0 %1097
        %v1099 = vsub.f32 %v1091, %v1098
        %v1100 = vmul.f32 %v1099, 1.442695
        %v1101 = vpow.pop %v1100
        %v1102 = vsel %vm828, %v1101, 0.0
        %1103 = vadd.xlane.f32.xlu0 %v1102
        %v1104 = vpop.xlane.xlu0 %1103
        %v1105 = vrcp.pop %v1104
        %v1106 = vmul.f32 %v1101, %v1105
        %v1107 = vpack.c.bf16 %v1106, %v1106
        %1108 = vrot.lane.b32.xlu0 %v824, 48
        %v1109 = vpop.permute.xlu0 %1108
        %v1111 = vsel %vm828, %v1107, 0
        %v1114 = vsel %vm892, %v1109, 0
        %1116 = vmatprep.subr.bf16.mxu0 0
        %1117 = vmatpush1.bf16.msra.mxu0 %v1114
        %1118 = vmatprep.subr.bf16.mxu0 0
        %1119 = vmatpush1.bf16.msra.mxu0 0
        %1120 = vmatprep.subr.bf16.mxu0 0
        %1121 = vmatpush1.bf16.msra.mxu0 0
        %1122 = vmatprep.subr.bf16.mxu0 0
        %1123 = vmatpush1.bf16.msra.mxu0 0
        %1124 = vmatprep.subr.bf16.mxu0 0
        %1125 = vmatpush1.bf16.msra.mxu0 0
        %1126 = vmatprep.subr.bf16.mxu0 0
        %1127 = vmatpush1.bf16.msra.mxu0 0
        %1128 = vmatprep.subr.bf16.mxu0 0
        %1129 = vmatpush1.bf16.msra.mxu0 0
        %1130 = vmatprep.subr.bf16.mxu0 0
        %1131 = vmatpush1.bf16.msra.mxu0 0
        %1132 = vmatprep.subr.bf16.mxu0 0
        %1133 = vmatpush1.bf16.msra.mxu0 0
        %1134 = vmatprep.subr.bf16.mxu0 0
        %1135 = vmatpush1.bf16.msra.mxu0 0
        %1136 = vmatprep.subr.bf16.mxu0 0
        %1137 = vmatpush1.bf16.msra.mxu0 0
        %1138 = vmatprep.subr.bf16.mxu0 0
        %1139 = vmatpush1.bf16.msra.mxu0 0
        %1140 = vmatprep.subr.bf16.mxu0 0
        %1141 = vmatpush1.bf16.msra.mxu0 0
        %1142 = vmatprep.subr.bf16.mxu0 0
        %1143 = vmatpush1.bf16.msra.mxu0 0
        %1144 = vmatprep.subr.bf16.mxu0 0
        %1145 = vmatpush1.bf16.msra.mxu0 0
        %1146 = vmatprep.subr.bf16.mxu0 0
        %1147 = vmatpush1.bf16.msra.mxu0 0
        %1148 = vmatprep.mubr.bf16.mxu0 0
        %1149 = vmatmul.mubr.bf16.gmra.mrb[0].mxu0 %v1111
        %v1150 = vpop.f32.mrb[0].mxu0
        %v1151 = vadd.f32 0.0, %v1150
        %v1152 = vpop.f32.mrb[0].mxu0
        %v1153 = vpop.f32.mrb[0].mxu0
        %v1154 = vpop.f32.mrb[0].mxu0
        %1155 = vdwg.mxu0
        %1156 = vrot.lane.b32.xlu0 %v824, 104
        %v1157 = vpop.permute.xlu0 %1156
        %1158 = vrot.lane.b32.xlu0 %v824, 72
        %v1159 = vpop.permute.xlu0 %1158
        %v1161 = vsel %vm828, %v1157, 0
        %v1164 = vsel %vm828, %v1159, 0
        %1166 = vmatprep.subr.bf16.mxu0 0
        %1167 = vmatpush1.bf16.xpose.msra.mxu0 %v1164
        %1168 = vmatprep.subr.bf16.mxu0 0
        %1169 = vmatpush1.bf16.xpose.msra.mxu0 0
        %1170 = vmatprep.subr.bf16.mxu0 0
        %1171 = vmatpush1.bf16.xpose.msra.mxu0 0
        %1172 = vmatprep.subr.bf16.mxu0 0
        %1173 = vmatpush1.bf16.xpose.msra.mxu0 0
        %1174 = vmatprep.subr.bf16.mxu0 0
        %1175 = vmatpush1.bf16.xpose.msra.mxu0 0
        %1176 = vmatprep.subr.bf16.mxu0 0
        %1177 = vmatpush1.bf16.xpose.msra.mxu0 0
        %1178 = vmatprep.subr.bf16.mxu0 0
        %1179 = vmatpush1.bf16.xpose.msra.mxu0 0
        %1180 = vmatprep.subr.bf16.mxu0 0
        %1181 = vmatpush1.bf16.xpose.msra.mxu0 0
        %1182 = vmatprep.subr.bf16.mxu0 0
        %1183 = vmatpush1.bf16.xpose.msra.mxu0 0
        %1184 = vmatprep.subr.bf16.mxu0 0
        %1185 = vmatpush1.bf16.xpose.msra.mxu0 0
        %1186 = vmatprep.subr.bf16.mxu0 0
        %1187 = vmatpush1.bf16.xpose.msra.mxu0 0
        %1188 = vmatprep.subr.bf16.mxu0 0
        %1189 = vmatpush1.bf16.xpose.msra.mxu0 0
        %1190 = vmatprep.subr.bf16.mxu0 0
        %1191 = vmatpush1.bf16.xpose.msra.mxu0 0
        %1192 = vmatprep.subr.bf16.mxu0 0
        %1193 = vmatpush1.bf16.xpose.msra.mxu0 0
        %1194 = vmatprep.subr.bf16.mxu0 0
        %1195 = vmatpush1.bf16.xpose.msra.mxu0 0
        %1196 = vmatprep.subr.bf16.mxu0 0
        %1197 = vmatpush1.bf16.xpose.msra.mxu0 0
        %1198 = vmatprep.mubr.bf16.mxu0 0
        %1199 = vmatmul.mubr.bf16.gmra.mrb[0].mxu0 %v1161
        %v1200 = vpop.f32.mrb[0].mxu0
        %v1201 = vadd.f32 0.0, %v1200
        %v1202 = vpop.f32.mrb[0].mxu0
        %v1203 = vpop.f32.mrb[0].mxu0
        %v1204 = vpop.f32.mrb[0].mxu0
        %1205 = vdwg.mxu0
        %v1206 = vsel %vm828, %v1201, -inf
        %1207 = vmax.xlane.f32.xlu0 %v1206
        %v1208 = vpop.xlane.xlu0 %1207
        %v1209 = vsub.f32 %v1201, %v1208
        %v1210 = vmul.f32 %v1209, 1.442695
        %v1211 = vpow.pop %v1210
        %v1212 = vsel %vm828, %v1211, 0.0
        %1213 = vadd.xlane.f32.xlu0 %v1212
        %v1214 = vpop.xlane.xlu0 %1213
        %v1215 = vrcp.pop %v1214
        %v1216 = vmul.f32 %v1211, %v1215
        %v1217 = vpack.c.bf16 %v1216, %v1216
        %1218 = vrot.lane.b32.xlu0 %v824, 40
        %v1219 = vpop.permute.xlu0 %1218
        %v1221 = vsel %vm828, %v1217, 0
        %v1224 = vsel %vm892, %v1219, 0
        %1226 = vmatprep.subr.bf16.mxu0 0
        %1227 = vmatpush1.bf16.msra.mxu0 %v1224
        %1228 = vmatprep.subr.bf16.mxu0 0
        %1229 = vmatpush1.bf16.msra.mxu0 0
        %1230 = vmatprep.subr.bf16.mxu0 0
        %1231 = vmatpush1.bf16.msra.mxu0 0
        %1232 = vmatprep.subr.bf16.mxu0 0
        %1233 = vmatpush1.bf16.msra.mxu0 0
        %1234 = vmatprep.subr.bf16.mxu0 0
        %1235 = vmatpush1.bf16.msra.mxu0 0
        %1236 = vmatprep.subr.bf16.mxu0 0
        %1237 = vmatpush1.bf16.msra.mxu0 0
        %1238 = vmatprep.subr.bf16.mxu0 0
        %1239 = vmatpush1.bf16.msra.mxu0 0
        %1240 = vmatprep.subr.bf16.mxu0 0
        %1241 = vmatpush1.bf16.msra.mxu0 0
        %1242 = vmatprep.subr.bf16.mxu0 0
        %1243 = vmatpush1.bf16.msra.mxu0 0
        %1244 = vmatprep.subr.bf16.mxu0 0
        %1245 = vmatpush1.bf16.msra.mxu0 0
        %1246 = vmatprep.subr.bf16.mxu0 0
        %1247 = vmatpush1.bf16.msra.mxu0 0
        %1248 = vmatprep.subr.bf16.mxu0 0
        %1249 = vmatpush1.bf16.msra.mxu0 0
        %1250 = vmatprep.subr.bf16.mxu0 0
        %1251 = vmatpush1.bf16.msra.mxu0 0
        %1252 = vmatprep.subr.bf16.mxu0 0
        %1253 = vmatpush1.bf16.msra.mxu0 0
        %1254 = vmatprep.subr.bf16.mxu0 0
        %1255 = vmatpush1.bf16.msra.mxu0 0
        %1256 = vmatprep.subr.bf16.mxu0 0
        %1257 = vmatpush1.bf16.msra.mxu0 0
        %1258 = vmatprep.mubr.bf16.mxu0 0
        %1259 = vmatmul.mubr.bf16.gmra.mrb[0].mxu0 %v1221
        %v1260 = vpop.f32.mrb[0].mxu0
        %v1261 = vadd.f32 0.0, %v1260
        %v1262 = vpop.f32.mrb[0].mxu0
        %v1263 = vpop.f32.mrb[0].mxu0
        %v1264 = vpop.f32.mrb[0].mxu0
        %1265 = vdwg.mxu0
        %1267 = vrot.lane.b32.xlu0 %v1041, 8
        %v1268 = vpop.permute.xlu0 %1267
        %1271 = vrot.lane.b32.xlu0 %v1151, 16
        %v1272 = vpop.permute.xlu0 %1271
        %1275 = vrot.lane.b32.xlu0 %v1261, 24
        %v1276 = vpop.permute.xlu0 %1275
        %v1278 = vsel %vm828, %v931, %v1268
        %vm1279 = vcmask 130048
        %v1280 = vsel %vm1279, %v1278, %v1272
        %vm1281 = vcmask 195584
        %v1282 = vsel %vm1281, %v1280, %v1276
        %v1283 = vpack.c.bf16 %v1282, %v1282
        %v1284 = vld [vmem:[%s700] sm:$0xf]
        %v1285 = vld [vmem:[%s700 + $0x4] sm:$0xf]
        %v1286 = vld [vmem:[%s700 + $0x8] sm:$0xf]
        %v1287 = vld [vmem:[%s700 + $0xc] sm:$0xf]
        %v1288 = vld [vmem:[%s703] sm:$0x1]
        %v1290 = vlaneseq
        %v1291 = vshrl.u32 %v1290, 7
        %v1292 = vsub.s32 0, %v1291
        %v1293 = vrot.slane %v1288, %v1292
        %v1299 = vunpack.c.l.b16 %v1284
        %v1300 = vunpack.c.l.b16 %v1285
        %v1301 = vunpack.c.l.b16 %v1286
        %v1302 = vunpack.c.l.b16 %v1287
        %v1303 = vpack.c.b16 %v1300, %v1299
        %v1304 = vpack.c.b16 %v1302, %v1301
        %v1308 = vsel %vm728, %v1283, 0
        %1310 = vmatprep.subr.bf16.mxu0 0
        %1311 = vmatpush1.bf16.msra.mxu0 %v1303
        %1312 = vmatprep.subr.bf16.mxu0 0
        %1313 = vmatpush1.bf16.msra.mxu0 %v1304
        %1314 = vmatprep.subr.bf16.mxu0 0
        %1315 = vmatpush1.bf16.msra.mxu0 0
        %1316 = vmatprep.subr.bf16.mxu0 0
        %1317 = vmatpush1.bf16.msra.mxu0 0
        %1318 = vmatprep.subr.bf16.mxu0 0
        %1319 = vmatpush1.bf16.msra.mxu0 0
        %1320 = vmatprep.subr.bf16.mxu0 0
        %1321 = vmatpush1.bf16.msra.mxu0 0
        %1322 = vmatprep.subr.bf16.mxu0 0
        %1323 = vmatpush1.bf16.msra.mxu0 0
        %1324 = vmatprep.subr.bf16.mxu0 0
        %1325 = vmatpush1.bf16.msra.mxu0 0
        %1326 = vmatprep.subr.bf16.mxu0 0
        %1327 = vmatpush1.bf16.msra.mxu0 0
        %1328 = vmatprep.subr.bf16.mxu0 0
        %1329 = vmatpush1.bf16.msra.mxu0 0
        %1330 = vmatprep.subr.bf16.mxu0 0
        %1331 = vmatpush1.bf16.msra.mxu0 0
        %1332 = vmatprep.subr.bf16.mxu0 0
        %1333 = vmatpush1.bf16.msra.mxu0 0
        %1334 = vmatprep.subr.bf16.mxu0 0
        %1335 = vmatpush1.bf16.msra.mxu0 0
        %1336 = vmatprep.subr.bf16.mxu0 0
        %1337 = vmatpush1.bf16.msra.mxu0 0
        %1338 = vmatprep.subr.bf16.mxu0 0
        %1339 = vmatpush1.bf16.msra.mxu0 0
        %1340 = vmatprep.subr.bf16.mxu0 0
        %1341 = vmatpush1.bf16.msra.mxu0 0
        %1342 = vmatprep.mubr.bf16.mxu0 0
        %1343 = vmatmul.mubr.bf16.gmra.mrb[0].mxu0 %v1308
        %v1344 = vpop.f32.mrb[0].mxu0
        %v1345 = vadd.f32 %v1293, %v1344
        %v1346 = vpop.f32.mrb[0].mxu0
        %v1347 = vpop.f32.mrb[0].mxu0
        %v1348 = vpop.f32.mrb[0].mxu0
        %1349 = vdwg.mxu0
        %v1350 = vadd.f32 %v725, %v1345
        %v1351 = vld [vmem:[%s576] sm:$0x1]
        %v1352 = vld [vmem:[%s584] sm:$0x1]
        %v1353 = vsel %vm728, %v1350, 0.0
        %1354 = vadd.xlane.f32.xlu0 %v1353
        %v1355 = vpop.xlane.xlu0 %1354
        %v1356 = vmul.f32 %v1355, %v732
        %v1357 = vsub.f32 %v1350, %v1356
        %v1358 = vmul.f32 %v1357, %v1357
        %v1359 = vsel %vm728, %v1358, 0.0
        %1360 = vadd.xlane.f32.xlu0 %v1359
        %v1361 = vpop.xlane.xlu0 %1360
        %v1362 = vmul.f32 %v1361, %v732
        %v1363 = vadd.f32 %v1362, 1e-05
        %v1364 = vrsqrt.pop %v1363
        %v1365 = vmul.f32 %v1357, %v1364
        %v1367 = vlaneseq
        %v1368 = vshrl.u32 %v1367, 7
        %v1369 = vsub.s32 0, %v1368
        %v1370 = vrot.slane %v1351, %v1369
        %v1372 = vmul.f32 %v1365, %v1370
        %v1374 = vlaneseq
        %v1375 = vshrl.u32 %v1374, 7
        %v1376 = vsub.s32 0, %v1375
        %v1377 = vrot.slane %v1352, %v1376
        %v1379 = vadd.f32 %v1372, %v1377
        %v1380 = vpack.c.bf16 %v1379, %v1379
        %v1381 = vld [vmem:[%s708] sm:$0xf]
        %v1382 = vld [vmem:[%s708 + $0x4] sm:$0xf]
        %v1383 = vld [vmem:[%s708 + $0x8] sm:$0xf]
        %v1384 = vld [vmem:[%s708 + $0xc] sm:$0xf]
        %v1385 = vld [vmem:[%s592] sm:$0x1]
        %v1387 = vlaneseq
        %v1388 = vshrl.u32 %v1387, 7
        %v1389 = vsub.s32 0, %v1388
        %v1390 = vrot.slane %v1385, %v1389
        %v1396 = vunpack.c.l.b16 %v1381
        %v1397 = vunpack.c.l.b16 %v1382
        %v1398 = vunpack.c.l.b16 %v1383
        %v1399 = vunpack.c.l.b16 %v1384
        %v1400 = vpack.c.b16 %v1397, %v1396
        %v1401 = vpack.c.b16 %v1399, %v1398
        %v1405 = vsel %vm728, %v1380, 0
        %1407 = vmatprep.subr.bf16.mxu0 0
        %1408 = vmatpush1.bf16.msra.mxu0 %v1400
        %1409 = vmatprep.subr.bf16.mxu0 0
        %1410 = vmatpush1.bf16.msra.mxu0 %v1401
        %1411 = vmatprep.subr.bf16.mxu0 0
        %1412 = vmatpush1.bf16.msra.mxu0 0
        %1413 = vmatprep.subr.bf16.mxu0 0
        %1414 = vmatpush1.bf16.msra.mxu0 0
        %1415 = vmatprep.subr.bf16.mxu0 0
        %1416 = vmatpush1.bf16.msra.mxu0 0
        %1417 = vmatprep.subr.bf16.mxu0 0
        %1418 = vmatpush1.bf16.msra.mxu0 0
        %1419 = vmatprep.subr.bf16.mxu0 0
        %1420 = vmatpush1.bf16.msra.mxu0 0
        %1421 = vmatprep.subr.bf16.mxu0 0
        %1422 = vmatpush1.bf16.msra.mxu0 0
        %1423 = vmatprep.subr.bf16.mxu0 0
        %1424 = vmatpush1.bf16.msra.mxu0 0
        %1425 = vmatprep.subr.bf16.mxu0 0
        %1426 = vmatpush1.bf16.msra.mxu0 0
        %1427 = vmatprep.subr.bf16.mxu0 0
        %1428 = vmatpush1.bf16.msra.mxu0 0
        %1429 = vmatprep.subr.bf16.mxu0 0
        %1430 = vmatpush1.bf16.msra.mxu0 0
        %1431 = vmatprep.subr.bf16.mxu0 0
        %1432 = vmatpush1.bf16.msra.mxu0 0
        %1433 = vmatprep.subr.bf16.mxu0 0
        %1434 = vmatpush1.bf16.msra.mxu0 0
        %1435 = vmatprep.subr.bf16.mxu0 0
        %1436 = vmatpush1.bf16.msra.mxu0 0
        %1437 = vmatprep.subr.bf16.mxu0 0
        %1438 = vmatpush1.bf16.msra.mxu0 0
        %1439 = vmatprep.mubr.bf16.mxu0 0
        %1440 = vmatmul.mubr.bf16.gmra.mrb[0].mxu0 %v1405
        %v1441 = vpop.f32.mrb[0].mxu0
        %v1442 = vadd.f32 %v1390, %v1441
        %v1443 = vpop.f32.mrb[0].mxu0
        %v1444 = vpop.f32.mrb[0].mxu0
        %v1445 = vpop.f32.mrb[0].mxu0
        %1446 = vdwg.mxu0
        %v1447 = vmul.f32 %v1442, 0.5
        %v1448 = vmul.f32 %v1442, 0.70710677
        %vm1449 = vcmp.ge.f32.partialorder %v1448, 0.0
        %v1450 = vsel %vm1449, 1.0, -1.0
        %v1451 = vand.u32 2147483647, %v1448
        %v1452 = vmul.f32 %v1451, 0.3275911
        %v1453 = vadd.f32 %v1452, 1.0
        %v1454 = vrcp.pop %v1453
        %v1455 = vmul.f32 1.0, %v1454
        %v1456 = vmul.f32 %v1455, 1.0614054
        %v1457 = vadd.f32 %v1456, -1.4531521
        %v1458 = vmul.f32 %v1457, %v1455
        %v1459 = vadd.f32 %v1458, 1.4214138
        %v1460 = vmul.f32 %v1459, %v1455
        %v1461 = vadd.f32 %v1460, -0.28449672
        %v1462 = vmul.f32 %v1461, %v1455
        %v1463 = vadd.f32 %v1462, 0.2548296
        %v1464 = vmul.f32 %v1463, %v1455
        %v1465 = vsub.f32 0.0, %v1451
        %v1466 = vmul.f32 %v1465, %v1451
        %v1467 = vmul.f32 %v1466, 1.442695
        %v1468 = vpow.pop %v1467
        %v1469 = vmul.f32 %v1464, %v1468
        %v1470 = vsub.f32 1.0, %v1469
        %v1471 = vmul.f32 %v1450, %v1470
        %v1472 = vadd.f32 %v1471, 1.0
        %v1473 = vmul.f32 %v1447, %v1472
        %v1474 = vpack.c.bf16 %v1473, %v1473
        %v1475 = vld [vmem:[%s713] sm:$0xf]
        %v1476 = vld [vmem:[%s713 + $0x4] sm:$0xf]
        %v1477 = vld [vmem:[%s713 + $0x8] sm:$0xf]
        %v1478 = vld [vmem:[%s713 + $0xc] sm:$0xf]
        %v1479 = vld [vmem:[%s713 + $0x10] sm:$0xf]
        %v1480 = vld [vmem:[%s713 + $0x14] sm:$0xf]
        %v1481 = vld [vmem:[%s713 + $0x18] sm:$0xf]
        %v1482 = vld [vmem:[%s713 + $0x1c] sm:$0xf]
        %v1483 = vld [vmem:[%s716] sm:$0x1]
        %v1485 = vlaneseq
        %v1486 = vshrl.u32 %v1485, 7
        %v1487 = vsub.s32 0, %v1486
        %v1488 = vrot.slane %v1483, %v1487
        %v1498 = vunpack.c.l.b16 %v1475
        %v1499 = vunpack.c.l.b16 %v1476
        %v1500 = vunpack.c.l.b16 %v1477
        %v1501 = vunpack.c.l.b16 %v1478
        %v1502 = vunpack.c.l.b16 %v1479
        %v1503 = vunpack.c.l.b16 %v1480
        %v1504 = vunpack.c.l.b16 %v1481
        %v1505 = vunpack.c.l.b16 %v1482
        %v1506 = vpack.c.b16 %v1499, %v1498
        %v1507 = vpack.c.b16 %v1501, %v1500
        %v1508 = vpack.c.b16 %v1503, %v1502
        %v1509 = vpack.c.b16 %v1505, %v1504
        %vm1514 = vcmask 523264
        %v1516 = vsel %vm1514, %v1474, 0
        %1518 = vmatprep.subr.bf16.mxu0 0
        %1519 = vmatpush1.bf16.msra.mxu0 %v1506
        %1520 = vmatprep.subr.bf16.mxu0 0
        %1521 = vmatpush1.bf16.msra.mxu0 %v1507
        %1522 = vmatprep.subr.bf16.mxu0 0
        %1523 = vmatpush1.bf16.msra.mxu0 %v1508
        %1524 = vmatprep.subr.bf16.mxu0 0
        %1525 = vmatpush1.bf16.msra.mxu0 %v1509
        %1526 = vmatprep.subr.bf16.mxu0 0
        %1527 = vmatpush1.bf16.msra.mxu0 0
        %1528 = vmatprep.subr.bf16.mxu0 0
        %1529 = vmatpush1.bf16.msra.mxu0 0
        %1530 = vmatprep.subr.bf16.mxu0 0
        %1531 = vmatpush1.bf16.msra.mxu0 0
        %1532 = vmatprep.subr.bf16.mxu0 0
        %1533 = vmatpush1.bf16.msra.mxu0 0
        %1534 = vmatprep.subr.bf16.mxu0 0
        %1535 = vmatpush1.bf16.msra.mxu0 0
        %1536 = vmatprep.subr.bf16.mxu0 0
        %1537 = vmatpush1.bf16.msra.mxu0 0
        %1538 = vmatprep.subr.bf16.mxu0 0
        %1539 = vmatpush1.bf16.msra.mxu0 0
        %1540 = vmatprep.subr.bf16.mxu0 0
        %1541 = vmatpush1.bf16.msra.mxu0 0
        %1542 = vmatprep.subr.bf16.mxu0 0
        %1543 = vmatpush1.bf16.msra.mxu0 0
        %1544 = vmatprep.subr.bf16.mxu0 0
        %1545 = vmatpush1.bf16.msra.mxu0 0
        %1546 = vmatprep.subr.bf16.mxu0 0
        %1547 = vmatpush1.bf16.msra.mxu0 0
        %1548 = vmatprep.subr.bf16.mxu0 0
        %1549 = vmatpush1.bf16.msra.mxu0 0
        %1550 = vmatprep.mubr.bf16.mxu0 0
        %1551 = vmatmul.mubr.bf16.gmra.mrb[0].mxu0 %v1516
        %v1552 = vpop.f32.mrb[0].mxu0
        %v1553 = vadd.f32 %v1488, %v1552
        %v1554 = vpop.f32.mrb[0].mxu0
        %v1555 = vpop.f32.mrb[0].mxu0
        %v1556 = vpop.f32.mrb[0].mxu0
        %1557 = vdwg.mxu0
        %v1558 = vadd.f32 %v1350, %v1553
        %1559 = vst.msk [vmem:[%s681] sm:$0xff] %vm728, %v1558
        %s1560 = sand.u32 %s394, 1
        %s1561 = scalar_lea.sflag [#allocation4], %s1560
        %s1562 = sand.u32 %s394, 1
        %s1563 = smul.addr %s1562, 8
        %s1564 = scalar_lea.vmem [#allocation10], %s1563
        // Predicated region
        $region93: #{tpu_custom_call.1} parent=71 // pred_check
          %p1565 = pneg %p404
        $region94: #{tpu_custom_call.1} parent=71 // pred_check_branch
          %1567 = sbr.rel (%p1565) target = $region96
        $region95: #{tpu_custom_call.1} parent=71 // pred_region
          %s1569 = ssub.s32 128, 128
          %1570 = vsyncadd %s1561, %s1569
          %s1571 = smul.addr %s40, 128
          %s1572 = scalar_lea.hbm %s13, %s1571
          %s1574 = sshll.u32 %s1564, 4
          %s1575 = int_to_ptr.vmem [resolvable:$true] %s1574
          %1577 = dma.vmem_to_hbm [thread:$0]  %s1575, 128, %s1572, %s1561
        $region96: #{tpu_custom_call.1} parent=71 // pred_fallthru
          _
      $region72: #{tpu_custom_call.1} parent=5 // pred_fallthru
        _
      %p1578 = scmp.le.s32.totalorder 2, %s31
      // Predicated region
      $region97: #{tpu_custom_call.1} parent=5 // pred_check
        %p1579 = pneg %p1578
      $region98: #{tpu_custom_call.1} parent=5 // pred_check_branch
        %1581 = sbr.rel (%p1579) target = $region100
      $region99: #{tpu_custom_call.1} parent=5 // pred_region
        %s1582 = ssub.s32 %s31, 2
        // Predicated region
        $region101: #{tpu_custom_call.1} parent=99 // pred_check
          %p1583 = pneg %p410
        $region102: #{tpu_custom_call.1} parent=99 // pred_check_branch
          %1585 = sbr.rel (%p1583) target = $region104
        $region103: #{tpu_custom_call.1} parent=99 // pred_region
          %s1586 = sand.u32 %s395, 1
          %s1587 = scalar_lea.sflag [#allocation4], %s1586
          %s1588 = sand.u32 %s395, 1
          %s1589 = smul.addr %s1588, 8
          %s1590 = scalar_lea.vmem [#allocation10], %s1589
          %1591 = dma.done %s1587, 128
        $region104: #{tpu_custom_call.1} parent=99 // pred_fallthru
          _
      $region100: #{tpu_custom_call.1} parent=5 // pred_fallthru
        _
    $region6: #{tpu_custom_call.1} parent=1 // loop_footer
      %s35 = sadd.s32 1, %s31
    $region7: #{tpu_custom_call.1} parent=1 // loop_footer_branch
      %30 = sbr.rel target = $region3
    $region8: #{tpu_custom_call.1} parent=1 // loop_exit
      _
    %1592 = vsyncpa [#allocation3], 1
    %s1593 = scalar_lea.sflag [#allocation3], 1
    %1594 = vsyncpa %s1593, 1
    %1595 = vsyncpa [#allocation6], 1
    %s1596 = scalar_lea.sflag [#allocation6], 1
    %1597 = vsyncpa %s1596, 1
    %1598 = vsyncpa [#allocation9], 1
    %s1599 = scalar_lea.sflag [#allocation9], 1
    %1600 = vsyncpa %s1599, 1
    %1601 = vsyncpa [#allocation4], 1
    %s1602 = scalar_lea.sflag [#allocation4], 1
    %1603 = vsyncpa %s1602, 1

</llo_original>
